<compile_context>
chip_gen: v7x
topology: tpu7x:2x2x1
jax: 0.10.0
libtpu: 0.0.40
codegen_flags: <defaults>
</compile_context>

<pallas_src>
import functools

import numpy as np
import jax
import jax.numpy as jnp
from jax.experimental import pallas as pl
from jax.experimental.pallas import tpu as pltpu


# ---------------------------------------------------------------------------
# Small helpers
# ---------------------------------------------------------------------------
def _round_up(x, m):
    return ((x + m - 1) // m) * m


def _pick_tile(dim, max_tile, quantum):
    t = min(max_tile, dim)
    t = max(quantum, (t // quantum) * quantum)
    while dim % t:
        t -= quantum
    return t


_VMEM_LIMIT_CACHE = [None]


def _vmem_limit_bytes():
    """~3/4 of per-core VMEM (96 MiB on v5e/v6e, 48 MiB on v7x), safe fallback."""
    if _VMEM_LIMIT_CACHE[0] is None:
        try:
            cap = int(pltpu.get_tpu_info().vmem_capacity_bytes)
            _VMEM_LIMIT_CACHE[0] = (cap * 3) // 4
        except Exception:
            _VMEM_LIMIT_CACHE[0] = 48 * 1024 * 1024
    return _VMEM_LIMIT_CACHE[0]


def _adaptive_avgpool_matrix(H, W, k):
    """(k*k, H*W) matrix reproducing nn.AdaptiveAvgPool2d(k) (PyTorch bins)."""
    P = np.zeros((k * k, H * W), dtype=np.float32)
    for i in range(k):
        h0 = (i * H) // k
        h1 = -((-(i + 1) * H) // k)           # ceil((i+1)*H/k)
        for j in range(k):
            w0 = (j * W) // k
            w1 = -((-(j + 1) * W) // k)
            inv_area = 1.0 / ((h1 - h0) * (w1 - w0))
            for hh in range(h0, h1):
                for ww in range(w0, w1):
                    P[i * k + j, hh * W + ww] = inv_area
    return P


# ---------------------------------------------------------------------------
# Kernel 1: fused QKV 1x1 conv + folded BN + ReLU + pyramid pooling
#   grid = (batch, HW blocks, K blocks)
#   outputs: v (N, HWp, Cp) f32  and  pooled (N, Rp, 2*Cp) f32
#   q/k never touch HBM: pooled accumulates P_tile @ qk_tile in the epilogue.
# ---------------------------------------------------------------------------
def _conv_pool_kernel(x_ref, w_ref, s_ref, b_ref, p_ref,
                      v_ref, pooled_ref, acc_ref, *, c2):
    h = pl.program_id(1)
    k = pl.program_id(2)

    @pl.when(k == 0)
    def _():
        acc_ref[...] = jnp.zeros_like(acc_ref)

    @pl.when((h == 0) & (k == 0))               # once per batch
    def _():
        pooled_ref[...] = jnp.zeros_like(pooled_ref)

    acc_ref[...] += jnp.dot(x_ref[0], w_ref[...],
                            preferred_element_type=jnp.float32)

    @pl.when(k == pl.num_programs(2) - 1)
    def _():
        y = jnp.maximum(acc_ref[...] * s_ref[...] + b_ref[...], 0.0)
        v_ref[0] = y[:, c2:]                                    # value map (f32)
        pooled_ref[0] += jnp.dot(p_ref[...], y[:, :c2].astype(jnp.bfloat16),
                                 preferred_element_type=jnp.float32)


def pallas_conv_pool(x3d, Wc, Sc, Bc, P, *, block_k=512):
    """x3d:(N,HWp,Cin), Wc:(Cin,3*Cp), Sc/Bc:(1,3*Cp), P:(Rp,HWp)
       -> (v:(N,HWp,Cp) f32, pooled:(N,Rp,2*Cp) f32)."""
    N, HWp, Cin = x3d.shape
    Cin2, C3 = Wc.shape
    assert Cin2 == Cin and C3 % 3 == 0
    Cp = C3 // 3
    c2 = 2 * Cp
    Rp, HWp2 = P.shape
    assert HWp2 == HWp

    # HW block: one full-extent block when small, else 512 (HWp padded to it).
    bm = HWp if HWp <= 512 else 512
    assert HWp % bm == 0

    # K tiling: divisor tile, never zero-pad K.
    if Cin % 128 == 0 and Cin > block_k:
        tk = _pick_tile(Cin, block_k, 128)
    else:
        tk = Cin
    assert Cin % tk == 0

    kernel = functools.partial(_conv_pool_kernel, c2=c2)
    v, pooled = pl.pallas_call(
        kernel,
        out_shape=(jax.ShapeDtypeStruct((N, HWp, Cp), jnp.float32),
                   jax.ShapeDtypeStruct((N, Rp, c2), jnp.float32)),
        grid_spec=pltpu.PrefetchScalarGridSpec(
            num_scalar_prefetch=0,
            grid=(N, HWp // bm, Cin // tk),
            in_specs=[pl.BlockSpec((1, bm, tk), lambda b, h, k: (b, h, k)),
                      pl.BlockSpec((tk, C3), lambda b, h, k: (k, 0)),
                      pl.BlockSpec((1, C3), lambda b, h, k: (0, 0)),
                      pl.BlockSpec((1, C3), lambda b, h, k: (0, 0)),
                      pl.BlockSpec((Rp, bm), lambda b, h, k: (0, h))],
            out_specs=[pl.BlockSpec((1, bm, Cp), lambda b, h, k: (b, h, 0)),
                       pl.BlockSpec((1, Rp, c2), lambda b, h, k: (b, 0, 0))],
            scratch_shapes=[pltpu.VMEM((bm, C3), jnp.float32)]),
        compiler_params=pltpu.CompilerParams(
            dimension_semantics=("parallel", "arbitrary", "arbitrary"),
            vmem_limit_bytes=_vmem_limit_bytes()),
    )(x3d.astype(jnp.bfloat16), Wc.astype(jnp.bfloat16),
      Sc.astype(jnp.float32), Bc.astype(jnp.float32), P.astype(jnp.bfloat16))
    return v, pooled


# ---------------------------------------------------------------------------
# Kernel 2: CAM attention (energy, reversed-max softmax, attn @ value, residual)
#   Attention stored once per batch, pre-transposed, in a bf16 VMEM scratch;
#   each HW tile is then a single MXU matmul + residual.
# ---------------------------------------------------------------------------
def _attn_kernel(gamma_ref, pooled_ref, v_ref, o_ref, attn_ref, *, cout):
    cp = attn_ref.shape[0]

    @pl.when(pl.program_id(1) == 0)              # once per batch
    def _():
        pooled = pooled_ref[0]                   # (Rp, 2*cp) f32
        pq = pooled[:, :cp].astype(jnp.bfloat16)
        pk = pooled[:, cp:].astype(jnp.bfloat16)
        # e_t[j, i] = energy[i, j] = sum_r PQ[r, i] * PK[r, j]  (already transposed)
        e_t = jax.lax.dot_general(pk, pq, (((0,), (0,)), ((), ())),
                                  preferred_element_type=jnp.float32)
        j_idx = jax.lax.broadcasted_iota(jnp.int32, (cp, cp), 0)
        valid = j_idx < cout                     # mask padded softmax rows (j)
        col_max = jnp.max(jnp.where(valid, e_t, -jnp.inf), axis=0, keepdims=True)
        p = jnp.where(valid, jnp.exp(col_max - e_t), 0.0)
        attn_ref[...] = (p / jnp.sum(p, axis=0, keepdims=True)).astype(jnp.bfloat16)

    v = v_ref[0]                                 # (hw_tile, cp) f32
    # out[h, i] = sum_j v[h, j] * attn[i, j] = (v @ attn_T)[h, i]
    out = jnp.dot(v.astype(jnp.bfloat16), attn_ref[...],
                  preferred_element_type=jnp.float32)
    o_ref[0] = gamma_ref[0] * out + v


def pallas_cam_attention(pooled, v, gamma, cout, *, hw_tile=None):
    """out[b] = gamma * (softmax(rowmax-energy) @ v[b]^T)^T + v[b]."""
    Nb, Rp, C2 = pooled.shape
    Nb2, HWp, Cp = v.shape
    assert Nb == Nb2 and C2 == 2 * Cp
    if hw_tile is None:
        hw_tile = HWp if HWp <= 512 else 512
    assert HWp % hw_tile == 0
    kernel = functools.partial(_attn_kernel, cout=cout)
    return pl.pallas_call(
        kernel,
        out_shape=jax.ShapeDtypeStruct((Nb, HWp, Cp), jnp.float32),
        grid_spec=pltpu.PrefetchScalarGridSpec(
            num_scalar_prefetch=1,                       # gamma -> SMEM scalar
            grid=(Nb, HWp // hw_tile),
            in_specs=[pl.BlockSpec((1, Rp, C2), lambda b, h, g: (b, 0, 0)),
                      pl.BlockSpec((1, hw_tile, Cp), lambda b, h, g: (b, h, 0))],
            out_specs=pl.BlockSpec((1, hw_tile, Cp), lambda b, h, g: (b, h, 0)),
            scratch_shapes=[pltpu.VMEM((Cp, Cp), jnp.bfloat16)]),
        compiler_params=pltpu.CompilerParams(
            dimension_semantics=("parallel", "arbitrary"),
            vmem_limit_bytes=_vmem_limit_bytes()),
    )(gamma.astype(jnp.float32), pooled, v)


# ---------------------------------------------------------------------------
# Pure-jnp references (identical math + identical bf16 casting policy)
# ---------------------------------------------------------------------------
def _ref_conv_pool(x3d, Wc, Sc, Bc, P, **_):
    y = jnp.einsum('nhk,kc->nhc', x3d.astype(jnp.bfloat16),
                   Wc.astype(jnp.bfloat16), preferred_element_type=jnp.float32)
    y = jnp.maximum(y * Sc + Bc, 0.0)
    C3 = Wc.shape[1]
    c2 = (C3 // 3) * 2
    v = y[..., c2:]
    pooled = jnp.einsum('rh,nhc->nrc', P.astype(jnp.bfloat16),
                        y[..., :c2].astype(jnp.bfloat16),
                        preferred_element_type=jnp.float32)
    return v, pooled


def _ref_cam_attention(pooled, v, gamma, cout, **_):
    Cp = v.shape[-1]
    pq = pooled[..., :Cp].astype(jnp.bfloat16)
    pk = pooled[..., Cp:].astype(jnp.bfloat16)
    energy = jnp.einsum('nri,nrj->nij', pq, pk, preferred_element_type=jnp.float32)
    valid = (jnp.arange(Cp) < cout)[None, None, :]
    row_max = jnp.max(jnp.where(valid, energy, -jnp.inf), axis=-1, keepdims=True)
    p = jnp.where(valid, jnp.exp(row_max - energy), 0.0)
    attn = (p / jnp.sum(p, axis=-1, keepdims=True)).astype(jnp.bfloat16)
    out = jnp.einsum('nhj,nij->nhi', v.astype(jnp.bfloat16), attn,
                     preferred_element_type=jnp.float32)
    return gamma[0] * out + v


# ---------------------------------------------------------------------------
# Parameters + forward pass (layout / padding glue in plain JAX)
# ---------------------------------------------------------------------------
def init_params(key, in_dim, out_dim):
    """Synthetic parameters: 3x (1x1 conv weight, eval-mode folded BN), gamma."""
    eps = 1e-5

    def bn_fold(c, salt):
        idx = jnp.arange(c, dtype=jnp.float32)
        g = 1.0 + 0.05 * (idx + salt) / c
        b = 0.02 * (idx - 0.3 * salt) / c
        mean = 0.01 * idx / c
        var = 1.0 + 0.03 * idx / c
        scale = g / jnp.sqrt(var + eps)
        bias = b - mean * scale
        return scale, bias

    keys = jax.random.split(key, 3)
    params = {}
    for i, name in enumerate(("query", "key", "value")):
        w = 0.1 * jax.random.normal(keys[i], (out_dim, in_dim), jnp.float32)
        s, b = bn_fold(out_dim, float(i))
        params[name] = (w, s, b)
    # PyTorch initialises gamma to 0 (output would reduce to proj_value); use a
    # nonzero "trained" value so the attention path is actually exercised.
    params["gamma"] = jnp.asarray([0.75], jnp.float32)
    return params


def guided_cam_forward(x_nchw, params, *, conv_pool_fn, attn_fn, block_k=512):
    N, Cin, H, W = x_nchw.shape
    wq, sq, bq = params["query"]
    wk, sk, bk = params["key"]
    wv, sv, bv = params["value"]
    Cout = wq.shape[0]
    Cp = _round_up(Cout, 128)                    # lane-dense channel padding
    HW = H * W

    # HW padding only up to the HW-block size (no forced 128 padding when one
    # full-extent block suffices).
    HWp = HW if HW <= 512 else _round_up(HW, 512)

    # Combined, channel-padded QKV weights / folded-BN affine (x is read once).
    Wc = jnp.zeros((Cin, 3 * Cp), jnp.float32)
    Sc = jnp.zeros((1, 3 * Cp), jnp.float32)
    Bc = jnp.zeros((1, 3 * Cp), jnp.float32)
    for i, (w, s, b) in enumerate(((wq, sq, bq), (wk, sk, bk), (wv, sv, bv))):
        Wc = Wc.at[:, i * Cp:i * Cp + Cout].set(w.T)
        Sc = Sc.at[:, i * Cp:i * Cp + Cout].set(s.reshape(1, -1))
        Bc = Bc.at[:, i * Cp:i * Cp + Cout].set(b.reshape(1, -1))

    x3d = jnp.transpose(x_nchw, (0, 2, 3, 1)).reshape(N, HW, Cin).astype(jnp.float32)
    if HWp != HW:
        x3d = jnp.pad(x3d, ((0, 0), (0, HWp - HW), (0, 0)))

    # Pyramid pooling (1,2,3,6) as one (Rp, HWp) matrix (PyTorch adaptive bins).
    P = np.concatenate([_adaptive_avgpool_matrix(H, W, k) for k in (1, 2, 3, 6)],
                       axis=0)
    R = P.shape[0]                               # 50
    Rp = _round_up(R, 16)                        # 64: bf16-sublane aligned
    P_pad = np.zeros((Rp, HWp), np.float32)
    P_pad[:R, :HW] = P
    P_pad = jnp.asarray(P_pad)

    v, pooled = conv_pool_fn(x3d, Wc, Sc, Bc, P_pad, block_k=block_k)
    out = attn_fn(pooled, v, params["gamma"], Cout)          # (N, HWp, Cp)

    out = out[:, :HW, :Cout].reshape(N, H, W, Cout)
    return jnp.transpose(out, (0, 3, 1, 2))                  # NCHW


# ---------------------------------------------------------------------------
if __name__ == "__main__":
    key = jax.random.PRNGKey(0)
    kx, kp = jax.random.split(key)

    def run_and_check(x, params, **kw):
        out = guided_cam_forward(x, params, conv_pool_fn=pallas_conv_pool,
                                 attn_fn=pallas_cam_attention, **kw)
        out = jax.block_until_ready(out)
        ref = guided_cam_forward(x, params, conv_pool_fn=_ref_conv_pool,
                                 attn_fn=_ref_cam_attention, **kw)
        ref = jax.block_until_ready(ref)
        np.testing.assert_allclose(np.asarray(out), np.asarray(ref),
                                   rtol=3e-3, atol=2e-3)
        return out

    # Primary toy config (2 batches, single full-extent HW block).
    N, Cin, H, W, Cout = 2, 4, 16, 16, 8
    x = jax.random.normal(kx, (N, Cin, H, W), jnp.float32)
    params = init_params(kp, Cin, Cout)
    out = run_and_check(x, params)
    assert out.shape == (N, Cout, H, W), out.shape

    # K-tiled accumulation path (Cin=256, block_k=128 -> two K blocks).
    x2 = jax.random.normal(jax.random.PRNGKey(1), (1, 256, 8, 8), jnp.float32)
    params2 = init_params(jax.random.PRNGKey(2), 256, 8)
    run_and_check(x2, params2, block_k=128)

    # Multi-HW-block path (HW=1024 -> two 512-row blocks: exercises the pooled
    # accumulator across HW tiles and the per-batch attention-scratch reuse).
    x3 = jax.random.normal(jax.random.PRNGKey(3), (1, 4, 32, 32), jnp.float32)
    params3 = init_params(jax.random.PRNGKey(4), 4, 8)
    run_and_check(x3, params3)

    print("KERNEL_OK")
</pallas_src>

<mosaic_0001>
module attributes {stable_mosaic.version = 11 : i64} {
  func.func @_conv_pool_kernel(%arg0: i32, %arg1: i32, %arg2: i32, %arg3: memref<1x256x4xbf16, #tpu.memory_space<vmem>>, %arg4: memref<4x384xbf16, #tpu.memory_space<vmem>>, %arg5: memref<1x384xf32, #tpu.memory_space<vmem>>, %arg6: memref<1x384xf32, #tpu.memory_space<vmem>>, %arg7: memref<64x256xbf16, #tpu.memory_space<vmem>>, %arg8: memref<1x256x128xf32, #tpu.memory_space<vmem>>, %arg9: memref<1x64x256xf32, #tpu.memory_space<vmem>>, %arg10: memref<256x384xf32, #tpu.memory_space<vmem>>) attributes {dimension_semantics = [#tpu.dimension_semantics<parallel>, #tpu.dimension_semantics<arbitrary>, #tpu.dimension_semantics<arbitrary>], iteration_bounds = array<i64: 2, 1, 1>, scalar_prefetch = 0 : i64, scratch_operands = 1 : i64, tpu.core_type = #tpu.core_type<tc>, window_params = [{transform_indices = @transform_0, window_bounds = array<i64: 1, 256, 4>}, {transform_indices = @transform_1, window_bounds = array<i64: 4, 384>}, {pipeline_mode = #tpu.pipeline_mode<synchronous>, transform_indices = @transform_2, window_bounds = array<i64: 1, 384>}, {pipeline_mode = #tpu.pipeline_mode<synchronous>, transform_indices = @transform_3, window_bounds = array<i64: 1, 384>}, {transform_indices = @transform_4, window_bounds = array<i64: 64, 256>}, {transform_indices = @transform_5, window_bounds = array<i64: 1, 256, 128>}, {transform_indices = @transform_6, window_bounds = array<i64: 1, 64, 256>}]} {
    %c0_i32 = arith.constant 0 : i32
    %0 = arith.cmpi eq, %arg2, %c0_i32 : i32
    %1 = arith.extui %0 : i1 to i32
    %c0_i32_0 = arith.constant 0 : i32
    %2 = arith.cmpi ne, %1, %c0_i32_0 : i32
    scf.if %2 {
      %cst_14 = arith.constant 0.000000e+00 : f32
      %18 = vector.broadcast %cst_14 : f32 to vector<256x384xf32>
      %c0_15 = arith.constant 0 : index
      %c0_16 = arith.constant 0 : index
      %19 = vector.load %arg10[%c0_15, %c0_16] : memref<256x384xf32, #tpu.memory_space<vmem>>, vector<256x384xf32>
      tpu.vector_store %arg10[%c0_15, %c0_16], %18 {strides = array<i32>} : memref<256x384xf32, #tpu.memory_space<vmem>>, vector<256x384xf32>,
    } else {
    }
    %c0_i32_1 = arith.constant 0 : i32
    %3 = arith.cmpi eq, %arg1, %c0_i32_1 : i32
    %c0_i32_2 = arith.constant 0 : i32
    %4 = arith.cmpi eq, %arg2, %c0_i32_2 : i32
    %5 = arith.andi %3, %4 : i1
    %6 = arith.extui %5 : i1 to i32
    %c0_i32_3 = arith.constant 0 : i32
    %7 = arith.cmpi ne, %6, %c0_i32_3 : i32
    scf.if %7 {
      %cst_14 = arith.constant 0.000000e+00 : f32
      %18 = vector.broadcast %cst_14 : f32 to vector<1x64x256xf32>
      %c0_15 = arith.constant 0 : index
      %c0_16 = arith.constant 0 : index
      %c0_17 = arith.constant 0 : index
      %19 = vector.load %arg9[%c0_15, %c0_16, %c0_17] : memref<1x64x256xf32, #tpu.memory_space<vmem>>, vector<1x64x256xf32>
      tpu.vector_store %arg9[%c0_15, %c0_16, %c0_17], %18 {strides = array<i32>} : memref<1x64x256xf32, #tpu.memory_space<vmem>>, vector<1x64x256xf32>,
    } else {
    }
    %c0 = arith.constant 0 : index
    %c0_4 = arith.constant 0 : index
    %8 = vector.load %arg10[%c0, %c0_4] : memref<256x384xf32, #tpu.memory_space<vmem>>, vector<256x384xf32>
    %c0_5 = arith.constant 0 : index
    %c0_6 = arith.constant 0 : index
    %c0_7 = arith.constant 0 : index
    %9 = vector.load %arg3[%c0_5, %c0_6, %c0_7] : memref<1x256x4xbf16, #tpu.memory_space<vmem>>, vector<1x256x4xbf16>
    %10 = vector.shape_cast %9 : vector<1x256x4xbf16> to vector<256x4xbf16>
    %c0_8 = arith.constant 0 : index
    %c0_9 = arith.constant 0 : index
    %11 = vector.load %arg4[%c0_8, %c0_9] : memref<4x384xbf16, #tpu.memory_space<vmem>>, vector<4x384xbf16>
    %cst = arith.constant dense<0.000000e+00> : vector<256x384xf32>
    %12 = tpu.matmul %10, %11, %cst {dimension_numbers = #tpu.dot_dimension_numbers<[1], [0], [0], [1], [0, 0, 1, 1], [], []>} : vector<256x4xbf16>, vector<4x384xbf16>, vector<256x384xf32> -> vector<256x384xf32>
    %13 = arith.addf %8, %12 : vector<256x384xf32>
    %c0_10 = arith.constant 0 : index
    %c0_11 = arith.constant 0 : index
    %14 = vector.load %arg10[%c0_10, %c0_11] : memref<256x384xf32, #tpu.memory_space<vmem>>, vector<256x384xf32>
    tpu.vector_store %arg10[%c0_10, %c0_11], %13 {strides = array<i32>} : memref<256x384xf32, #tpu.memory_space<vmem>>, vector<256x384xf32>,
    %c0_i32_12 = arith.constant 0 : i32
    %15 = arith.cmpi eq, %arg2, %c0_i32_12 : i32
    %16 = arith.extui %15 : i1 to i32
    %c0_i32_13 = arith.constant 0 : i32
    %17 = arith.cmpi ne, %16, %c0_i32_13 : i32
    scf.if %17 {
      %c0_14 = arith.constant 0 : index
      %c0_15 = arith.constant 0 : index
      %18 = vector.load %arg10[%c0_14, %c0_15] : memref<256x384xf32, #tpu.memory_space<vmem>>, vector<256x384xf32>
      %c0_16 = arith.constant 0 : index
      %c0_17 = arith.constant 0 : index
      %19 = vector.load %arg5[%c0_16, %c0_17] : memref<1x384xf32, #tpu.memory_space<vmem>>, vector<1x384xf32>
      %20 = vector.broadcast %19 : vector<1x384xf32> to vector<256x384xf32>
      %21 = arith.mulf %18, %20 : vector<256x384xf32>
      %c0_18 = arith.constant 0 : index
      %c0_19 = arith.constant 0 : index
      %22 = vector.load %arg6[%c0_18, %c0_19] : memref<1x384xf32, #tpu.memory_space<vmem>>, vector<1x384xf32>
      %23 = vector.broadcast %22 : vector<1x384xf32> to vector<256x384xf32>
      %24 = arith.addf %21, %23 : vector<256x384xf32>
      %cst_20 = arith.constant 0.000000e+00 : f32
      %25 = vector.broadcast %cst_20 : f32 to vector<256x384xf32>
      %26 = arith.maximumf %24, %25 : vector<256x384xf32>
      %27 = vector.extract_strided_slice %26 {offsets = [0, 256], sizes = [256, 128], strides = [1, 1]} : vector<256x384xf32> to vector<256x128xf32>
      %c0_21 = arith.constant 0 : index
      %c0_22 = arith.constant 0 : index
      %c0_23 = arith.constant 0 : index
      %28 = vector.load %arg8[%c0_21, %c0_22, %c0_23] : memref<1x256x128xf32, #tpu.memory_space<vmem>>, vector<1x256x128xf32>
      %29 = vector.shape_cast %28 : vector<1x256x128xf32> to vector<256x128xf32>
      %30 = vector.shape_cast %27 : vector<256x128xf32> to vector<1x256x128xf32>
      tpu.vector_store %arg8[%c0_21, %c0_22, %c0_23], %30 {strides = array<i32>} : memref<1x256x128xf32, #tpu.memory_space<vmem>>, vector<1x256x128xf32>,
      %c0_24 = arith.constant 0 : index
      %c0_25 = arith.constant 0 : index
      %c0_26 = arith.constant 0 : index
      %31 = vector.load %arg9[%c0_24, %c0_25, %c0_26] : memref<1x64x256xf32, #tpu.memory_space<vmem>>, vector<1x64x256xf32>
      %32 = vector.shape_cast %31 : vector<1x64x256xf32> to vector<64x256xf32>
      %c0_27 = arith.constant 0 : index
      %c0_28 = arith.constant 0 : index
      %33 = vector.load %arg7[%c0_27, %c0_28] : memref<64x256xbf16, #tpu.memory_space<vmem>>, vector<64x256xbf16>
      %34 = vector.extract_strided_slice %26 {offsets = [0, 0], sizes = [256, 256], strides = [1, 1]} : vector<256x384xf32> to vector<256x256xf32>
      %35 = arith.truncf %34 : vector<256x256xf32> to vector<256x256xbf16>
      %cst_29 = arith.constant dense<0.000000e+00> : vector<64x256xf32>
      %36 = tpu.matmul %33, %35, %cst_29 {dimension_numbers = #tpu.dot_dimension_numbers<[1], [0], [0], [1], [0, 0, 1, 1], [], []>} : vector<64x256xbf16>, vector<256x256xbf16>, vector<64x256xf32> -> vector<64x256xf32>
      %37 = arith.addf %32, %36 : vector<64x256xf32>
      %c0_30 = arith.constant 0 : index
      %c0_31 = arith.constant 0 : index
      %c0_32 = arith.constant 0 : index
      %38 = vector.load %arg9[%c0_30, %c0_31, %c0_32] : memref<1x64x256xf32, #tpu.memory_space<vmem>>, vector<1x64x256xf32>
      %39 = vector.shape_cast %38 : vector<1x64x256xf32> to vector<64x256xf32>
      %40 = vector.shape_cast %37 : vector<64x256xf32> to vector<1x64x256xf32>
      tpu.vector_store %arg9[%c0_30, %c0_31, %c0_32], %40 {strides = array<i32>} : memref<1x64x256xf32, #tpu.memory_space<vmem>>, vector<1x64x256xf32>,
    } else {
    }
    return
  }
  func.func @transform_0(%arg0: i32, %arg1: i32, %arg2: i32) -> (i32, i32, i32) {
    %c0_i32 = arith.constant 0 : i32
    return %arg0, %arg1, %arg2 : i32, i32, i32
  }
  func.func @transform_1(%arg0: i32, %arg1: i32, %arg2: i32) -> (i32, i32) {
    %c0_i32 = arith.constant 0 : i32
    %c0_i32_0 = arith.constant 0 : i32
    return %arg2, %c0_i32 : i32, i32
  }
  func.func @transform_2(%arg0: i32, %arg1: i32, %arg2: i32) -> (i32, i32) {
    %c0_i32 = arith.constant 0 : i32
    %c0_i32_0 = arith.constant 0 : i32
    %c0_i32_1 = arith.constant 0 : i32
    return %c0_i32, %c0_i32_0 : i32, i32
  }
  func.func @transform_3(%arg0: i32, %arg1: i32, %arg2: i32) -> (i32, i32) {
    %c0_i32 = arith.constant 0 : i32
    %c0_i32_0 = arith.constant 0 : i32
    %c0_i32_1 = arith.constant 0 : i32
    return %c0_i32, %c0_i32_0 : i32, i32
  }
  func.func @transform_4(%arg0: i32, %arg1: i32, %arg2: i32) -> (i32, i32) {
    %c0_i32 = arith.constant 0 : i32
    %c0_i32_0 = arith.constant 0 : i32
    return %c0_i32, %arg1 : i32, i32
  }
  func.func @transform_5(%arg0: i32, %arg1: i32, %arg2: i32) -> (i32, i32, i32) {
    %c0_i32 = arith.constant 0 : i32
    %c0_i32_0 = arith.constant 0 : i32
    return %arg0, %arg1, %c0_i32 : i32, i32, i32
  }
  func.func @transform_6(%arg0: i32, %arg1: i32, %arg2: i32) -> (i32, i32, i32) {
    %c0_i32 = arith.constant 0 : i32
    %c0_i32_0 = arith.constant 0 : i32
    %c0_i32_1 = arith.constant 0 : i32
    return %arg0, %c0_i32, %c0_i32_0 : i32, i32, i32
  }
}

</mosaic_0001>

<llo_original>
// kernel: tpu_custom_call.1
$region0: #{tpu_custom_call.1}
  #allocation0 [shape = 'u32[]', space=smem, size = 0x4, offset = 0x4, fixed_abs, tag = 'smem constant byte address 0x4 - core index']
  #allocation1 [shape = 'u32[144,128]{1,0:T(1,128)}', space=vmem, size = 0x12000, scoped, tag = 'internal scratch']
  #allocation2 [shape = 'f32[256,384]{1,0:T(8,128)}', space=vmem, size = 0x60000, scoped, tag = 'scratch operand']
  %s0 = inlined_call_operand.vmem [shape: bf16[2,256,4], index: 0, kind: input, shape index: {}]
  %s1 = inlined_call_operand.vmem [shape: bf16[4,384], index: 1, kind: input, shape index: {}]
  %s2 = inlined_call_operand.vmem [shape: f32[1,384], index: 2, kind: input, shape index: {}]
  %s3 = inlined_call_operand.vmem [shape: f32[1,384], index: 3, kind: input, shape index: {}]
  %s4 = inlined_call_operand.vmem [shape: bf16[64,256], index: 4, kind: input, shape index: {}]
  %s5 = inlined_call_operand.hbm [shape: f32[2,256,128], index: 5, kind: output, shape index: {0}]
  %s6 = inlined_call_operand.hbm [shape: f32[2,64,256], index: 6, kind: output, shape index: {1}]
  %7 = xla_tuple %s5, %s6
  %s8 = sld [smem:[#allocation0]]
  $region73: #{tpu_custom_call.1} parent=0
    _
  %s10 = ssub.s32 1, %s8
  %s11 = scalar_select 0, %s10, %s8
  $region1: #{tpu_custom_call.1} parent=0
    #allocation3 [shape = 'u8[262144]{0}', space=vmem, size = 0x40000, scoped, tag = 'output window, operand 0']
    #allocation4 [shape = 's32[2]{0}', space=sflag, size = 0x8, scoped, tag = 'scoped memory for tpu_custom_call.1']
    #allocation5 [shape = 'u8[131072]{0}', space=vmem, size = 0x20000, scoped, tag = 'output window, operand 1']
    #allocation6 [shape = 's32[2]{0}', space=sflag, size = 0x8, scoped, tag = 'scoped memory for tpu_custom_call.1']
    %12 = vsyncpa [#allocation4], 0
    %s13 = scalar_lea.sflag [#allocation4], 1
    %14 = vsyncpa %s13, 0
    %15 = vsyncpa [#allocation6], 0
    %s16 = scalar_lea.sflag [#allocation6], 1
    %17 = vsyncpa %s16, 0
    loop: start=0, step=1, limit=4
    $region2: #{tpu_custom_call.1} parent=1 // loop_pre_header
      _
    $region3: #{tpu_custom_call.1} parent=1 // loop_header
      %s19 = sphi 0, %s23
      %p20 = scmp.ge.s32.totalorder %s19, 4
      %s26 = sphi 0, %s45
      %s27 = sphi 0, %s41
      %s28 = sphi 0, %s37
      %s29 = sphi 0, %s26
      %s30 = sphi 0, %s27
      %s31 = sphi 0, %s28
      %s32 = sphi 0, %s29
      %s33 = sphi 0, %s30
      %s34 = sphi 0, %s31
      %s52 = sphi 0, %s54
      %s55 = sphi 0, %s52
      %s56 = sphi 0, %s55
      %s72 = sphi 0, %s56
      %s78 = sphi 0, %s80
      %s81 = sphi 0, %s78
      %s82 = sphi 0, %s81
      %s98 = sphi 0, %s82
      %s102 = sphi 0, %s102
      %s104 = sphi 0, %s102
      %s105 = sphi 0, %s104
      %s119 = sphi 0, %s105
      %s123 = sphi 0, %s123
      %s125 = sphi 0, %s123
      %s126 = sphi 0, %s125
      %s140 = sphi 0, %s126
      %s146 = sphi 0, %s148
      %s149 = sphi 0, %s146
      %s150 = sphi 0, %s149
      %s166 = sphi 0, %s150
      %s174 = sphi 0, %s176
      %s177 = sphi 0, %s174
      %s178 = sphi 0, %s177
      %s194 = sphi 0, %s178
      %s200 = sphi 0, %s202
      %s203 = sphi 0, %s200
      %s204 = sphi 0, %s203
      %s220 = sphi 0, %s204
    $region4: #{tpu_custom_call.1} parent=1 // loop_header_branch
      %22 = sbr.rel (%p20) target = $region8
    $region5: #{tpu_custom_call.1} parent=1 // loop_body
      %s24 = ssub.s32 %s19, 1
      %s25 = ssub.s32 %s19, 2
      %s35 = sadd.s32 1, %s28
      %p36 = scmp.ge.s32.totalorder %s35, 1
      %s37 = scalar_select %p36, 0, %s35
      %s38 = sadd.s32 1, %s27
      %s39 = scalar_select %p36, %s38, %s27
      %p40 = scmp.ge.s32.totalorder %s39, 1
      %s41 = scalar_select %p40, 0, %s39
      %s42 = sadd.s32 1, %s26
      %s43 = scalar_select %p40, %s42, %s26
      %p44 = scmp.ge.s32.totalorder %s43, 2
      %s45 = scalar_select %p44, 0, %s43
      %s46 = ssub.s32 %s26, %s45
      %s47 = ssub.s32 %s27, %s41
      %s48 = sor.u32 %s46, %s47
      %s49 = ssub.s32 %s28, %s37
      %s50 = sor.u32 %s48, %s49
      %p51 = scmp.eq.s32.totalorder %s50, 0
      %s53 = sadd.s32 %s52, 1
      %s54 = scalar_select %p51, %s52, %s53
      %p57 = pneg %p51
      %p58 = scmp.eq.s32.totalorder %s19, 1
      %p59 = por %p57, %p58
      %p60 = scmp.ne.s32.totalorder %s52, %s55
      %p61 = scmp.eq.s32.totalorder %s19, 0
      %p62 = por %p60, %p61
      %p63 = scmp.ne.s32.totalorder %s52, %s55
      %p64 = scmp.eq.s32.totalorder %s24, 1
      %p65 = por %p63, %p64
      %p66 = scmp.ne.s32.totalorder %s55, %s56
      %p67 = scmp.eq.s32.totalorder %s24, 0
      %p68 = por %p66, %p67
      %p69 = scmp.ne.s32.totalorder %s55, %s56
      %p70 = scmp.eq.s32.totalorder %s25, 1
      %p71 = por %p69, %p70
      %p73 = scmp.ne.s32.totalorder %s56, %s72
      %p74 = scmp.eq.s32.totalorder %s25, 0
      %p75 = por %p73, %p74
      %s76 = ssub.s32 %s28, %s37
      %p77 = scmp.eq.s32.totalorder %s76, 0
      %s79 = sadd.s32 %s78, 1
      %s80 = scalar_select %p77, %s78, %s79
      %p83 = pneg %p77
      %p84 = scmp.eq.s32.totalorder %s19, 1
      %p85 = por %p83, %p84
      %p86 = scmp.ne.s32.totalorder %s78, %s81
      %p87 = scmp.eq.s32.totalorder %s19, 0
      %p88 = por %p86, %p87
      %p89 = scmp.ne.s32.totalorder %s78, %s81
      %p90 = scmp.eq.s32.totalorder %s24, 1
      %p91 = por %p89, %p90
      %p92 = scmp.ne.s32.totalorder %s81, %s82
      %p93 = scmp.eq.s32.totalorder %s24, 0
      %p94 = por %p92, %p93
      %p95 = scmp.ne.s32.totalorder %s81, %s82
      %p96 = scmp.eq.s32.totalorder %s25, 1
      %p97 = por %p95, %p96
      %p99 = scmp.ne.s32.totalorder %s82, %s98
      %p100 = scmp.eq.s32.totalorder %s25, 0
      %p101 = por %p99, %p100
      %s103 = sadd.s32 %s102, 1
      %p106 = scmp.eq.s32.totalorder %s19, 1
      %p107 = scmp.ne.s32.totalorder %s102, %s104
      %p108 = scmp.eq.s32.totalorder %s19, 0
      %p109 = por %p107, %p108
      %p110 = scmp.ne.s32.totalorder %s102, %s104
      %p111 = scmp.eq.s32.totalorder %s24, 1
      %p112 = por %p110, %p111
      %p113 = scmp.ne.s32.totalorder %s104, %s105
      %p114 = scmp.eq.s32.totalorder %s24, 0
      %p115 = por %p113, %p114
      %p116 = scmp.ne.s32.totalorder %s104, %s105
      %p117 = scmp.eq.s32.totalorder %s25, 1
      %p118 = por %p116, %p117
      %p120 = scmp.ne.s32.totalorder %s105, %s119
      %p121 = scmp.eq.s32.totalorder %s25, 0
      %p122 = por %p120, %p121
      %s124 = sadd.s32 %s123, 1
      %p127 = scmp.eq.s32.totalorder %s19, 1
      %p128 = scmp.ne.s32.totalorder %s123, %s125
      %p129 = scmp.eq.s32.totalorder %s19, 0
      %p130 = por %p128, %p129
      %p131 = scmp.ne.s32.totalorder %s123, %s125
      %p132 = scmp.eq.s32.totalorder %s24, 1
      %p133 = por %p131, %p132
      %p134 = scmp.ne.s32.totalorder %s125, %s126
      %p135 = scmp.eq.s32.totalorder %s24, 0
      %p136 = por %p134, %p135
      %p137 = scmp.ne.s32.totalorder %s125, %s126
      %p138 = scmp.eq.s32.totalorder %s25, 1
      %p139 = por %p137, %p138
      %p141 = scmp.ne.s32.totalorder %s126, %s140
      %p142 = scmp.eq.s32.totalorder %s25, 0
      %p143 = por %p141, %p142
      %s144 = ssub.s32 %s27, %s41
      %p145 = scmp.eq.s32.totalorder %s144, 0
      %s147 = sadd.s32 %s146, 1
      %s148 = scalar_select %p145, %s146, %s147
      %p151 = pneg %p145
      %p152 = scmp.eq.s32.totalorder %s19, 1
      %p153 = por %p151, %p152
      %p154 = scmp.ne.s32.totalorder %s146, %s149
      %p155 = scmp.eq.s32.totalorder %s19, 0
      %p156 = por %p154, %p155
      %p157 = scmp.ne.s32.totalorder %s146, %s149
      %p158 = scmp.eq.s32.totalorder %s24, 1
      %p159 = por %p157, %p158
      %p160 = scmp.ne.s32.totalorder %s149, %s150
      %p161 = scmp.eq.s32.totalorder %s24, 0
      %p162 = por %p160, %p161
      %p163 = scmp.ne.s32.totalorder %s149, %s150
      %p164 = scmp.eq.s32.totalorder %s25, 1
      %p165 = por %p163, %p164
      %p167 = scmp.ne.s32.totalorder %s150, %s166
      %p168 = scmp.eq.s32.totalorder %s25, 0
      %p169 = por %p167, %p168
      %s170 = ssub.s32 %s26, %s45
      %s171 = ssub.s32 %s27, %s41
      %s172 = sor.u32 %s170, %s171
      %p173 = scmp.eq.s32.totalorder %s172, 0
      %s175 = sadd.s32 %s174, 1
      %s176 = scalar_select %p173, %s174, %s175
      %p179 = pneg %p173
      %p180 = scmp.eq.s32.totalorder %s19, 1
      %p181 = por %p179, %p180
      %p182 = scmp.ne.s32.totalorder %s174, %s177
      %p183 = scmp.eq.s32.totalorder %s19, 0
      %p184 = por %p182, %p183
      %p185 = scmp.ne.s32.totalorder %s174, %s177
      %p186 = scmp.eq.s32.totalorder %s24, 1
      %p187 = por %p185, %p186
      %p188 = scmp.ne.s32.totalorder %s177, %s178
      %p189 = scmp.eq.s32.totalorder %s24, 0
      %p190 = por %p188, %p189
      %p191 = scmp.ne.s32.totalorder %s177, %s178
      %p192 = scmp.eq.s32.totalorder %s25, 1
      %p193 = por %p191, %p192
      %p195 = scmp.ne.s32.totalorder %s178, %s194
      %p196 = scmp.eq.s32.totalorder %s25, 0
      %p197 = por %p195, %p196
      %s198 = ssub.s32 %s26, %s45
      %p199 = scmp.eq.s32.totalorder %s198, 0
      %s201 = sadd.s32 %s200, 1
      %s202 = scalar_select %p199, %s200, %s201
      %p205 = pneg %p199
      %p206 = scmp.eq.s32.totalorder %s19, 1
      %p207 = por %p205, %p206
      %p208 = scmp.ne.s32.totalorder %s200, %s203
      %p209 = scmp.eq.s32.totalorder %s19, 0
      %p210 = por %p208, %p209
      %p211 = scmp.ne.s32.totalorder %s200, %s203
      %p212 = scmp.eq.s32.totalorder %s24, 1
      %p213 = por %p211, %p212
      %p214 = scmp.ne.s32.totalorder %s203, %s204
      %p215 = scmp.eq.s32.totalorder %s24, 0
      %p216 = por %p214, %p215
      %p217 = scmp.ne.s32.totalorder %s203, %s204
      %p218 = scmp.eq.s32.totalorder %s25, 1
      %p219 = por %p217, %p218
      %p221 = scmp.ne.s32.totalorder %s204, %s220
      %p222 = scmp.eq.s32.totalorder %s25, 0
      %p223 = por %p221, %p222
      %p224 = scmp.le.s32.totalorder 1, %s19
      %p225 = scmp.lt.s32.totalorder %s19, 3
      %p226 = pnand %p224, %p225
      %p227 = pneg %p226
      // Predicated region
      $region9: #{tpu_custom_call.1} parent=5 // pred_check
        _
      $region10: #{tpu_custom_call.1} parent=5 // pred_check_branch
        %229 = sbr.rel (%p226) target = $region12
      $region11: #{tpu_custom_call.1} parent=5 // pred_region
        %s230 = ssub.s32 %s19, 1
        // Predicated region
        $region13: #{tpu_custom_call.1} parent=11 // pred_check
          %p231 = pneg %p94
        $region14: #{tpu_custom_call.1} parent=11 // pred_check_branch
          %233 = sbr.rel (%p231) target = $region16
        $region15: #{tpu_custom_call.1} parent=11 // pred_region
          %p234 = scmp.lt.s32.totalorder %s31, 0
          %s235 = scalar_select %p234, %s31, 0
          %s236 = smul.addr %s235, 3
          %s237 = smul.addr %s236, 2
          %s238 = scalar_lea.vmem %s1, %s237
        $region16: #{tpu_custom_call.1} parent=11 // pred_fallthru
          _
        // Predicated region
        $region17: #{tpu_custom_call.1} parent=11 // pred_check
          %p239 = pneg %p115
        $region18: #{tpu_custom_call.1} parent=11 // pred_check_branch
          %241 = sbr.rel (%p239) target = $region20
        $region19: #{tpu_custom_call.1} parent=11 // pred_region
          _
        $region20: #{tpu_custom_call.1} parent=11 // pred_fallthru
          _
        // Predicated region
        $region21: #{tpu_custom_call.1} parent=11 // pred_check
          %p242 = pneg %p136
        $region22: #{tpu_custom_call.1} parent=11 // pred_check_branch
          %244 = sbr.rel (%p242) target = $region24
        $region23: #{tpu_custom_call.1} parent=11 // pred_region
          _
        $region24: #{tpu_custom_call.1} parent=11 // pred_fallthru
          _
        // Predicated region
        $region25: #{tpu_custom_call.1} parent=11 // pred_check
          %p245 = pneg %p162
        $region26: #{tpu_custom_call.1} parent=11 // pred_check_branch
          %247 = sbr.rel (%p245) target = $region28
        $region27: #{tpu_custom_call.1} parent=11 // pred_region
          %s248 = smul.u32 2, %s30
          %p249 = scmp.lt.s32.totalorder %s248, 1
          %s250 = scalar_select %p249, %s248, 1
          %s251 = smul.addr %s250, 4
          %s252 = scalar_lea.vmem %s4, %s251
          %s253 = smul.u32 2, %s30
        $region28: #{tpu_custom_call.1} parent=11 // pred_fallthru
          _
      $region12: #{tpu_custom_call.1} parent=5 // pred_fallthru
        _
      %p254 = scmp.lt.s32.totalorder %s19, 2
      // Predicated region
      $region29: #{tpu_custom_call.1} parent=5 // pred_check
        %p255 = pneg %p254
      $region30: #{tpu_custom_call.1} parent=5 // pred_check_branch
        %257 = sbr.rel (%p255) target = $region32
      $region31: #{tpu_custom_call.1} parent=5 // pred_region
        // Predicated region
        $region33: #{tpu_custom_call.1} parent=31 // pred_check
          %p258 = pneg %p62
        $region34: #{tpu_custom_call.1} parent=31 // pred_check_branch
          %260 = sbr.rel (%p258) target = $region36
        $region35: #{tpu_custom_call.1} parent=31 // pred_region
          %s261 = smul.u32 32, %s27
          %p262 = scmp.lt.s32.totalorder %s26, 1
          %s263 = scalar_select %p262, %s26, 1
          %p264 = scmp.lt.s32.totalorder %s261, 31
          %s265 = scalar_select %p264, %s261, 31
          %p266 = scmp.lt.s32.totalorder %s28, 0
          %s267 = scalar_select %p266, %s28, 0
          %s268 = sadd.s32 %s267, %s265
          %s269 = smul.addr %s263, 32
          %s270 = sadd.s32 %s268, %s269
          %s271 = smul.addr %s270, 4
          %s272 = scalar_lea.vmem %s0, %s271
          %s273 = smul.u32 32, %s27
        $region36: #{tpu_custom_call.1} parent=31 // pred_fallthru
          _
      $region32: #{tpu_custom_call.1} parent=5 // pred_fallthru
        _
      %p274 = scmp.le.s32.totalorder 1, %s19
      %p275 = scmp.lt.s32.totalorder %s19, 3
      %p276 = pnand %p274, %p275
      %p277 = pneg %p276
      // Predicated region
      $region37: #{tpu_custom_call.1} parent=5 // pred_check
        _
      $region38: #{tpu_custom_call.1} parent=5 // pred_check_branch
        %279 = sbr.rel (%p276) target = $region40
      $region39: #{tpu_custom_call.1} parent=5 // pred_region
        %s280 = ssub.s32 %s19, 1
        %s281 = smul.u32 32, %s30
        %p282 = scmp.lt.s32.totalorder %s29, 1
        %s283 = scalar_select %p282, %s29, 1
        %p284 = scmp.lt.s32.totalorder %s281, 31
        %s285 = scalar_select %p284, %s281, 31
        %p286 = scmp.lt.s32.totalorder %s31, 0
        %s287 = scalar_select %p286, %s31, 0
        %s288 = sadd.s32 %s287, %s285
        %s289 = smul.addr %s283, 32
        %s290 = sadd.s32 %s288, %s289
        %s291 = smul.addr %s290, 4
        %s292 = scalar_lea.vmem %s0, %s291
        %p293 = pneg %p68
        %p294 = pneg %p65
        %p295 = scmp.lt.s32.totalorder %s31, 0
        %s296 = scalar_select %p295, %s31, 0
        %s297 = smul.addr %s296, 3
        %s298 = smul.addr %s297, 2
        %s299 = scalar_lea.vmem %s1, %s298
        %p300 = pneg %p94
        %p301 = pneg %p91
        %p302 = pneg %p115
        %p303 = pneg %p112
        %p304 = pneg %p136
        %p305 = pneg %p133
        %s306 = smul.u32 2, %s30
        %p307 = scmp.lt.s32.totalorder %s306, 1
        %s308 = scalar_select %p307, %s306, 1
        %s309 = smul.addr %s308, 4
        %s310 = scalar_lea.vmem %s4, %s309
        %p311 = pneg %p162
        %p312 = pneg %p159
        %p313 = pneg %p190
        %p314 = pneg %p187
        %s315 = sand.u32 %s177, 1
        %s316 = scalar_lea.sflag [#allocation4], %s315
        %s317 = sand.u32 %s177, 1
        %s318 = smul.addr %s317, 256
        %s319 = scalar_lea.vmem [#allocation3], %s318
        %p320 = pneg %p216
        %p321 = pneg %p213
        %s322 = sand.u32 %s203, 1
        %s323 = scalar_lea.sflag [#allocation6], %s322
        %s324 = sand.u32 %s203, 1
        %s325 = smul.addr %s324, 128
        %s326 = scalar_lea.vmem [#allocation5], %s325
        %s327 = smul.u32 32, %s30
        %p328 = scmp.lt.s32.totalorder %s29, 1
        %s329 = scalar_select %p328, %s29, 1
        %p330 = scmp.lt.s32.totalorder %s327, 31
        %s331 = scalar_select %p330, %s327, 31
        %p332 = scmp.lt.s32.totalorder %s31, 0
        %s333 = scalar_select %p332, %s31, 0
        %s334 = sadd.s32 %s333, %s331
        %s335 = smul.addr %s329, 32
        %s336 = sadd.s32 %s334, %s335
        %s337 = smul.addr %s336, 4
        %s338 = scalar_lea.vmem %s0, %s337
        %s339 = smul.u32 32, %s30
        %p340 = scmp.lt.s32.totalorder %s31, 0
        %s341 = scalar_select %p340, %s31, 0
        %s342 = smul.addr %s341, 3
        %s343 = smul.addr %s342, 2
        %s344 = scalar_lea.vmem %s1, %s343
        %s345 = smul.u32 2, %s30
        %p346 = scmp.lt.s32.totalorder %s345, 1
        %s347 = scalar_select %p346, %s345, 1
        %s348 = smul.addr %s347, 4
        %s349 = scalar_lea.vmem %s4, %s348
        %s350 = smul.u32 2, %s30
        %s351 = smul.u32 32, %s30
        %p353 = scmp.eq.s32.totalorder %s31, 0
        // Predicated region
        $region41: #{tpu_custom_call.1} parent=39 // pred_check
          %p354 = pneg %p353
        $region42: #{tpu_custom_call.1} parent=39 // pred_check_branch
          %356 = sbr.rel (%p354) target = $region44
        $region43: #{tpu_custom_call.1} parent=39 // pred_region
          %357 = vst [vmem:[#allocation2] sm:$0xff] 0.0
          %358 = vst [vmem:[#allocation2 + $0x8] sm:$0xff] 0.0
          %359 = vst [vmem:[#allocation2 + $0x10] sm:$0xff] 0.0
          %360 = vst [vmem:[#allocation2 + $0x18] sm:$0xff] 0.0
          %361 = vst [vmem:[#allocation2 + $0x20] sm:$0xff] 0.0
          %362 = vst [vmem:[#allocation2 + $0x28] sm:$0xff] 0.0
          %363 = vst [vmem:[#allocation2 + $0x30] sm:$0xff] 0.0
          %364 = vst [vmem:[#allocation2 + $0x38] sm:$0xff] 0.0
          %365 = vst [vmem:[#allocation2 + $0x40] sm:$0xff] 0.0
          %366 = vst [vmem:[#allocation2 + $0x48] sm:$0xff] 0.0
          %367 = vst [vmem:[#allocation2 + $0x50] sm:$0xff] 0.0
          %368 = vst [vmem:[#allocation2 + $0x58] sm:$0xff] 0.0
          %369 = vst [vmem:[#allocation2 + $0x60] sm:$0xff] 0.0
          %370 = vst [vmem:[#allocation2 + $0x68] sm:$0xff] 0.0
          %371 = vst [vmem:[#allocation2 + $0x70] sm:$0xff] 0.0
          %372 = vst [vmem:[#allocation2 + $0x78] sm:$0xff] 0.0
          %373 = vst [vmem:[#allocation2 + $0x80] sm:$0xff] 0.0
          %374 = vst [vmem:[#allocation2 + $0x88] sm:$0xff] 0.0
          %375 = vst [vmem:[#allocation2 + $0x90] sm:$0xff] 0.0
          %376 = vst [vmem:[#allocation2 + $0x98] sm:$0xff] 0.0
          %377 = vst [vmem:[#allocation2 + $0xa0] sm:$0xff] 0.0
          %378 = vst [vmem:[#allocation2 + $0xa8] sm:$0xff] 0.0
          %379 = vst [vmem:[#allocation2 + $0xb0] sm:$0xff] 0.0
          %380 = vst [vmem:[#allocation2 + $0xb8] sm:$0xff] 0.0
          %381 = vst [vmem:[#allocation2 + $0xc0] sm:$0xff] 0.0
          %382 = vst [vmem:[#allocation2 + $0xc8] sm:$0xff] 0.0
          %383 = vst [vmem:[#allocation2 + $0xd0] sm:$0xff] 0.0
          %384 = vst [vmem:[#allocation2 + $0xd8] sm:$0xff] 0.0
          %385 = vst [vmem:[#allocation2 + $0xe0] sm:$0xff] 0.0
          %386 = vst [vmem:[#allocation2 + $0xe8] sm:$0xff] 0.0
          %387 = vst [vmem:[#allocation2 + $0xf0] sm:$0xff] 0.0
          %388 = vst [vmem:[#allocation2 + $0xf8] sm:$0xff] 0.0
          %389 = vst [vmem:[#allocation2 + $0x100] sm:$0xff] 0.0
          %390 = vst [vmem:[#allocation2 + $0x108] sm:$0xff] 0.0
          %391 = vst [vmem:[#allocation2 + $0x110] sm:$0xff] 0.0
          %392 = vst [vmem:[#allocation2 + $0x118] sm:$0xff] 0.0
          %393 = vst [vmem:[#allocation2 + $0x120] sm:$0xff] 0.0
          %394 = vst [vmem:[#allocation2 + $0x128] sm:$0xff] 0.0
          %395 = vst [vmem:[#allocation2 + $0x130] sm:$0xff] 0.0
          %396 = vst [vmem:[#allocation2 + $0x138] sm:$0xff] 0.0
          %397 = vst [vmem:[#allocation2 + $0x140] sm:$0xff] 0.0
          %398 = vst [vmem:[#allocation2 + $0x148] sm:$0xff] 0.0
          %399 = vst [vmem:[#allocation2 + $0x150] sm:$0xff] 0.0
          %400 = vst [vmem:[#allocation2 + $0x158] sm:$0xff] 0.0
          %401 = vst [vmem:[#allocation2 + $0x160] sm:$0xff] 0.0
          %402 = vst [vmem:[#allocation2 + $0x168] sm:$0xff] 0.0
          %403 = vst [vmem:[#allocation2 + $0x170] sm:$0xff] 0.0
          %404 = vst [vmem:[#allocation2 + $0x178] sm:$0xff] 0.0
          %405 = vst [vmem:[#allocation2 + $0x180] sm:$0xff] 0.0
          %406 = vst [vmem:[#allocation2 + $0x188] sm:$0xff] 0.0
          %407 = vst [vmem:[#allocation2 + $0x190] sm:$0xff] 0.0
          %408 = vst [vmem:[#allocation2 + $0x198] sm:$0xff] 0.0
          %409 = vst [vmem:[#allocation2 + $0x1a0] sm:$0xff] 0.0
          %410 = vst [vmem:[#allocation2 + $0x1a8] sm:$0xff] 0.0
          %411 = vst [vmem:[#allocation2 + $0x1b0] sm:$0xff] 0.0
          %412 = vst [vmem:[#allocation2 + $0x1b8] sm:$0xff] 0.0
          %413 = vst [vmem:[#allocation2 + $0x1c0] sm:$0xff] 0.0
          %414 = vst [vmem:[#allocation2 + $0x1c8] sm:$0xff] 0.0
          %415 = vst [vmem:[#allocation2 + $0x1d0] sm:$0xff] 0.0
          %416 = vst [vmem:[#allocation2 + $0x1d8] sm:$0xff] 0.0
          %417 = vst [vmem:[#allocation2 + $0x1e0] sm:$0xff] 0.0
          %418 = vst [vmem:[#allocation2 + $0x1e8] sm:$0xff] 0.0
          %419 = vst [vmem:[#allocation2 + $0x1f0] sm:$0xff] 0.0
          %420 = vst [vmem:[#allocation2 + $0x1f8] sm:$0xff] 0.0
          %421 = vst [vmem:[#allocation2 + $0x200] sm:$0xff] 0.0
          %422 = vst [vmem:[#allocation2 + $0x208] sm:$0xff] 0.0
          %423 = vst [vmem:[#allocation2 + $0x210] sm:$0xff] 0.0
          %424 = vst [vmem:[#allocation2 + $0x218] sm:$0xff] 0.0
          %425 = vst [vmem:[#allocation2 + $0x220] sm:$0xff] 0.0
          %426 = vst [vmem:[#allocation2 + $0x228] sm:$0xff] 0.0
          %427 = vst [vmem:[#allocation2 + $0x230] sm:$0xff] 0.0
          %428 = vst [vmem:[#allocation2 + $0x238] sm:$0xff] 0.0
          %429 = vst [vmem:[#allocation2 + $0x240] sm:$0xff] 0.0
          %430 = vst [vmem:[#allocation2 + $0x248] sm:$0xff] 0.0
          %431 = vst [vmem:[#allocation2 + $0x250] sm:$0xff] 0.0
          %432 = vst [vmem:[#allocation2 + $0x258] sm:$0xff] 0.0
          %433 = vst [vmem:[#allocation2 + $0x260] sm:$0xff] 0.0
          %434 = vst [vmem:[#allocation2 + $0x268] sm:$0xff] 0.0
          %435 = vst [vmem:[#allocation2 + $0x270] sm:$0xff] 0.0
          %436 = vst [vmem:[#allocation2 + $0x278] sm:$0xff] 0.0
          %437 = vst [vmem:[#allocation2 + $0x280] sm:$0xff] 0.0
          %438 = vst [vmem:[#allocation2 + $0x288] sm:$0xff] 0.0
          %439 = vst [vmem:[#allocation2 + $0x290] sm:$0xff] 0.0
          %440 = vst [vmem:[#allocation2 + $0x298] sm:$0xff] 0.0
          %441 = vst [vmem:[#allocation2 + $0x2a0] sm:$0xff] 0.0
          %442 = vst [vmem:[#allocation2 + $0x2a8] sm:$0xff] 0.0
          %443 = vst [vmem:[#allocation2 + $0x2b0] sm:$0xff] 0.0
          %444 = vst [vmem:[#allocation2 + $0x2b8] sm:$0xff] 0.0
          %445 = vst [vmem:[#allocation2 + $0x2c0] sm:$0xff] 0.0
          %446 = vst [vmem:[#allocation2 + $0x2c8] sm:$0xff] 0.0
          %447 = vst [vmem:[#allocation2 + $0x2d0] sm:$0xff] 0.0
          %448 = vst [vmem:[#allocation2 + $0x2d8] sm:$0xff] 0.0
          %449 = vst [vmem:[#allocation2 + $0x2e0] sm:$0xff] 0.0
          %450 = vst [vmem:[#allocation2 + $0x2e8] sm:$0xff] 0.0
          %451 = vst [vmem:[#allocation2 + $0x2f0] sm:$0xff] 0.0
          %452 = vst [vmem:[#allocation2 + $0x2f8] sm:$0xff] 0.0
        $region44: #{tpu_custom_call.1} parent=39 // pred_fallthru
          _
        %p453 = scmp.eq.s32.totalorder %s30, 0
        %p454 = pnand %p453, %p353
        %p455 = pneg %p454
        // Predicated region
        $region45: #{tpu_custom_call.1} parent=39 // pred_check
          _
        $region46: #{tpu_custom_call.1} parent=39 // pred_check_branch
          %457 = sbr.rel (%p454) target = $region48
        $region47: #{tpu_custom_call.1} parent=39 // pred_region
          %458 = vst [vmem:[%s326] sm:$0xff] 0.0
          %459 = vst [vmem:[%s326 + $0x8] sm:$0xff] 0.0
          %460 = vst [vmem:[%s326 + $0x10] sm:$0xff] 0.0
          %461 = vst [vmem:[%s326 + $0x18] sm:$0xff] 0.0
          %462 = vst [vmem:[%s326 + $0x20] sm:$0xff] 0.0
          %463 = vst [vmem:[%s326 + $0x28] sm:$0xff] 0.0
          %464 = vst [vmem:[%s326 + $0x30] sm:$0xff] 0.0
          %465 = vst [vmem:[%s326 + $0x38] sm:$0xff] 0.0
          %466 = vst [vmem:[%s326 + $0x40] sm:$0xff] 0.0
          %467 = vst [vmem:[%s326 + $0x48] sm:$0xff] 0.0
          %468 = vst [vmem:[%s326 + $0x50] sm:$0xff] 0.0
          %469 = vst [vmem:[%s326 + $0x58] sm:$0xff] 0.0
          %470 = vst [vmem:[%s326 + $0x60] sm:$0xff] 0.0
          %471 = vst [vmem:[%s326 + $0x68] sm:$0xff] 0.0
          %472 = vst [vmem:[%s326 + $0x70] sm:$0xff] 0.0
          %473 = vst [vmem:[%s326 + $0x78] sm:$0xff] 0.0
        $region48: #{tpu_custom_call.1} parent=39 // pred_fallthru
          _
        %v474 = vld [vmem:[#allocation2] sm:$0xff]
        %v475 = vld [vmem:[#allocation2 + $0x8] sm:$0xff]
        %v476 = vld [vmem:[#allocation2 + $0x10] sm:$0xff]
        %v477 = vld [vmem:[#allocation2 + $0x18] sm:$0xff]
        %v478 = vld [vmem:[#allocation2 + $0x20] sm:$0xff]
        %v479 = vld [vmem:[#allocation2 + $0x28] sm:$0xff]
        %v480 = vld [vmem:[#allocation2 + $0x30] sm:$0xff]
        %v481 = vld [vmem:[#allocation2 + $0x38] sm:$0xff]
        %v482 = vld [vmem:[#allocation2 + $0x40] sm:$0xff]
        %v483 = vld [vmem:[#allocation2 + $0x48] sm:$0xff]
        %v484 = vld [vmem:[#allocation2 + $0x50] sm:$0xff]
        %v485 = vld [vmem:[#allocation2 + $0x58] sm:$0xff]
        %v486 = vld [vmem:[#allocation2 + $0x60] sm:$0xff]
        %v487 = vld [vmem:[#allocation2 + $0x68] sm:$0xff]
        %v488 = vld [vmem:[#allocation2 + $0x70] sm:$0xff]
        %v489 = vld [vmem:[#allocation2 + $0x78] sm:$0xff]
        %v490 = vld [vmem:[#allocation2 + $0x80] sm:$0xff]
        %v491 = vld [vmem:[#allocation2 + $0x88] sm:$0xff]
        %v492 = vld [vmem:[#allocation2 + $0x90] sm:$0xff]
        %v493 = vld [vmem:[#allocation2 + $0x98] sm:$0xff]
        %v494 = vld [vmem:[#allocation2 + $0xa0] sm:$0xff]
        %v495 = vld [vmem:[#allocation2 + $0xa8] sm:$0xff]
        %v496 = vld [vmem:[#allocation2 + $0xb0] sm:$0xff]
        %v497 = vld [vmem:[#allocation2 + $0xb8] sm:$0xff]
        %v498 = vld [vmem:[#allocation2 + $0xc0] sm:$0xff]
        %v499 = vld [vmem:[#allocation2 + $0xc8] sm:$0xff]
        %v500 = vld [vmem:[#allocation2 + $0xd0] sm:$0xff]
        %v501 = vld [vmem:[#allocation2 + $0xd8] sm:$0xff]
        %v502 = vld [vmem:[#allocation2 + $0xe0] sm:$0xff]
        %v503 = vld [vmem:[#allocation2 + $0xe8] sm:$0xff]
        %v504 = vld [vmem:[#allocation2 + $0xf0] sm:$0xff]
        %v505 = vld [vmem:[#allocation2 + $0xf8] sm:$0xff]
        %v506 = vld [vmem:[#allocation2 + $0x100] sm:$0xff]
        %v507 = vld [vmem:[#allocation2 + $0x108] sm:$0xff]
        %v508 = vld [vmem:[#allocation2 + $0x110] sm:$0xff]
        %v509 = vld [vmem:[#allocation2 + $0x118] sm:$0xff]
        %v510 = vld [vmem:[#allocation2 + $0x120] sm:$0xff]
        %v511 = vld [vmem:[#allocation2 + $0x128] sm:$0xff]
        %v512 = vld [vmem:[#allocation2 + $0x130] sm:$0xff]
        %v513 = vld [vmem:[#allocation2 + $0x138] sm:$0xff]
        %v514 = vld [vmem:[#allocation2 + $0x140] sm:$0xff]
        %v515 = vld [vmem:[#allocation2 + $0x148] sm:$0xff]
        %v516 = vld [vmem:[#allocation2 + $0x150] sm:$0xff]
        %v517 = vld [vmem:[#allocation2 + $0x158] sm:$0xff]
        %v518 = vld [vmem:[#allocation2 + $0x160] sm:$0xff]
        %v519 = vld [vmem:[#allocation2 + $0x168] sm:$0xff]
        %v520 = vld [vmem:[#allocation2 + $0x170] sm:$0xff]
        %v521 = vld [vmem:[#allocation2 + $0x178] sm:$0xff]
        %v522 = vld [vmem:[#allocation2 + $0x180] sm:$0xff]
        %v523 = vld [vmem:[#allocation2 + $0x188] sm:$0xff]
        %v524 = vld [vmem:[#allocation2 + $0x190] sm:$0xff]
        %v525 = vld [vmem:[#allocation2 + $0x198] sm:$0xff]
        %v526 = vld [vmem:[#allocation2 + $0x1a0] sm:$0xff]
        %v527 = vld [vmem:[#allocation2 + $0x1a8] sm:$0xff]
        %v528 = vld [vmem:[#allocation2 + $0x1b0] sm:$0xff]
        %v529 = vld [vmem:[#allocation2 + $0x1b8] sm:$0xff]
        %v530 = vld [vmem:[#allocation2 + $0x1c0] sm:$0xff]
        %v531 = vld [vmem:[#allocation2 + $0x1c8] sm:$0xff]
        %v532 = vld [vmem:[#allocation2 + $0x1d0] sm:$0xff]
        %v533 = vld [vmem:[#allocation2 + $0x1d8] sm:$0xff]
        %v534 = vld [vmem:[#allocation2 + $0x1e0] sm:$0xff]
        %v535 = vld [vmem:[#allocation2 + $0x1e8] sm:$0xff]
        %v536 = vld [vmem:[#allocation2 + $0x1f0] sm:$0xff]
        %v537 = vld [vmem:[#allocation2 + $0x1f8] sm:$0xff]
        %v538 = vld [vmem:[#allocation2 + $0x200] sm:$0xff]
        %v539 = vld [vmem:[#allocation2 + $0x208] sm:$0xff]
        %v540 = vld [vmem:[#allocation2 + $0x210] sm:$0xff]
        %v541 = vld [vmem:[#allocation2 + $0x218] sm:$0xff]
        %v542 = vld [vmem:[#allocation2 + $0x220] sm:$0xff]
        %v543 = vld [vmem:[#allocation2 + $0x228] sm:$0xff]
        %v544 = vld [vmem:[#allocation2 + $0x230] sm:$0xff]
        %v545 = vld [vmem:[#allocation2 + $0x238] sm:$0xff]
        %v546 = vld [vmem:[#allocation2 + $0x240] sm:$0xff]
        %v547 = vld [vmem:[#allocation2 + $0x248] sm:$0xff]
        %v548 = vld [vmem:[#allocation2 + $0x250] sm:$0xff]
        %v549 = vld [vmem:[#allocation2 + $0x258] sm:$0xff]
        %v550 = vld [vmem:[#allocation2 + $0x260] sm:$0xff]
        %v551 = vld [vmem:[#allocation2 + $0x268] sm:$0xff]
        %v552 = vld [vmem:[#allocation2 + $0x270] sm:$0xff]
        %v553 = vld [vmem:[#allocation2 + $0x278] sm:$0xff]
        %v554 = vld [vmem:[#allocation2 + $0x280] sm:$0xff]
        %v555 = vld [vmem:[#allocation2 + $0x288] sm:$0xff]
        %v556 = vld [vmem:[#allocation2 + $0x290] sm:$0xff]
        %v557 = vld [vmem:[#allocation2 + $0x298] sm:$0xff]
        %v558 = vld [vmem:[#allocation2 + $0x2a0] sm:$0xff]
        %v559 = vld [vmem:[#allocation2 + $0x2a8] sm:$0xff]
        %v560 = vld [vmem:[#allocation2 + $0x2b0] sm:$0xff]
        %v561 = vld [vmem:[#allocation2 + $0x2b8] sm:$0xff]
        %v562 = vld [vmem:[#allocation2 + $0x2c0] sm:$0xff]
        %v563 = vld [vmem:[#allocation2 + $0x2c8] sm:$0xff]
        %v564 = vld [vmem:[#allocation2 + $0x2d0] sm:$0xff]
        %v565 = vld [vmem:[#allocation2 + $0x2d8] sm:$0xff]
        %v566 = vld [vmem:[#allocation2 + $0x2e0] sm:$0xff]
        %v567 = vld [vmem:[#allocation2 + $0x2e8] sm:$0xff]
        %v568 = vld [vmem:[#allocation2 + $0x2f0] sm:$0xff]
        %v569 = vld [vmem:[#allocation2 + $0x2f8] sm:$0xff]
        %v570 = vld [vmem:[%s338] sm:$0xf]
        %v571 = vld [vmem:[%s338 + $0x4] sm:$0xf]
        %v572 = vld [vmem:[%s338 + $0x8] sm:$0xf]
        %v573 = vld [vmem:[%s338 + $0xc] sm:$0xf]
        %v574 = vld [vmem:[%s338 + $0x10] sm:$0xf]
        %v575 = vld [vmem:[%s338 + $0x14] sm:$0xf]
        %v576 = vld [vmem:[%s338 + $0x18] sm:$0xf]
        %v577 = vld [vmem:[%s338 + $0x1c] sm:$0xf]
        %v578 = vld [vmem:[%s338 + $0x20] sm:$0xf]
        %v579 = vld [vmem:[%s338 + $0x24] sm:$0xf]
        %v580 = vld [vmem:[%s338 + $0x28] sm:$0xf]
        %v581 = vld [vmem:[%s338 + $0x2c] sm:$0xf]
        %v582 = vld [vmem:[%s338 + $0x30] sm:$0xf]
        %v583 = vld [vmem:[%s338 + $0x34] sm:$0xf]
        %v584 = vld [vmem:[%s338 + $0x38] sm:$0xf]
        %v585 = vld [vmem:[%s338 + $0x3c] sm:$0xf]
        %v586 = vld [vmem:[%s338 + $0x40] sm:$0xf]
        %v587 = vld [vmem:[%s338 + $0x44] sm:$0xf]
        %v588 = vld [vmem:[%s338 + $0x48] sm:$0xf]
        %v589 = vld [vmem:[%s338 + $0x4c] sm:$0xf]
        %v590 = vld [vmem:[%s338 + $0x50] sm:$0xf]
        %v591 = vld [vmem:[%s338 + $0x54] sm:$0xf]
        %v592 = vld [vmem:[%s338 + $0x58] sm:$0xf]
        %v593 = vld [vmem:[%s338 + $0x5c] sm:$0xf]
        %v594 = vld [vmem:[%s338 + $0x60] sm:$0xf]
        %v595 = vld [vmem:[%s338 + $0x64] sm:$0xf]
        %v596 = vld [vmem:[%s338 + $0x68] sm:$0xf]
        %v597 = vld [vmem:[%s338 + $0x6c] sm:$0xf]
        %v598 = vld [vmem:[%s338 + $0x70] sm:$0xf]
        %v599 = vld [vmem:[%s338 + $0x74] sm:$0xf]
        %v600 = vld [vmem:[%s338 + $0x78] sm:$0xf]
        %v601 = vld [vmem:[%s338 + $0x7c] sm:$0xf]
        %v602 = vld [vmem:[%s344] sm:$0x3f]
        %v635 = vunpack.c.l.b16 %v570
        %v636 = vunpack.c.l.b16 %v571
        %v637 = vunpack.c.l.b16 %v572
        %v638 = vunpack.c.l.b16 %v573
        %v639 = vunpack.c.l.b16 %v574
        %v640 = vunpack.c.l.b16 %v575
        %v641 = vunpack.c.l.b16 %v576
        %v642 = vunpack.c.l.b16 %v577
        %v643 = vunpack.c.l.b16 %v578
        %v644 = vunpack.c.l.b16 %v579
        %v645 = vunpack.c.l.b16 %v580
        %v646 = vunpack.c.l.b16 %v581
        %v647 = vunpack.c.l.b16 %v582
        %v648 = vunpack.c.l.b16 %v583
        %v649 = vunpack.c.l.b16 %v584
        %v650 = vunpack.c.l.b16 %v585
        %v651 = vunpack.c.l.b16 %v586
        %v652 = vunpack.c.l.b16 %v587
        %v653 = vunpack.c.l.b16 %v588
        %v654 = vunpack.c.l.b16 %v589
        %v655 = vunpack.c.l.b16 %v590
        %v656 = vunpack.c.l.b16 %v591
        %v657 = vunpack.c.l.b16 %v592
        %v658 = vunpack.c.l.b16 %v593
        %v659 = vunpack.c.l.b16 %v594
        %v660 = vunpack.c.l.b16 %v595
        %v661 = vunpack.c.l.b16 %v596
        %v662 = vunpack.c.l.b16 %v597
        %v663 = vunpack.c.l.b16 %v598
        %v664 = vunpack.c.l.b16 %v599
        %v665 = vunpack.c.l.b16 %v600
        %v666 = vunpack.c.l.b16 %v601
        %v667 = vpack.c.b16 %v636, %v635
        %v668 = vpack.c.b16 %v638, %v637
        %v669 = vpack.c.b16 %v640, %v639
        %v670 = vpack.c.b16 %v642, %v641
        %v671 = vpack.c.b16 %v644, %v643
        %v672 = vpack.c.b16 %v646, %v645
        %v673 = vpack.c.b16 %v648, %v647
        %v674 = vpack.c.b16 %v650, %v649
        %v675 = vpack.c.b16 %v652, %v651
        %v676 = vpack.c.b16 %v654, %v653
        %v677 = vpack.c.b16 %v656, %v655
        %v678 = vpack.c.b16 %v658, %v657
        %v679 = vpack.c.b16 %v660, %v659
        %v680 = vpack.c.b16 %v662, %v661
        %v681 = vpack.c.b16 %v664, %v663
        %v682 = vpack.c.b16 %v666, %v665
        %v684 = vcombine.high %v602, %v602
        %v686 = vunpack.c.l.s4 1983009808
        %v687 = vunpack.c.0.s8 %v686
        %v688 = vlaneseq
        %v689 = vshrl.u32 %v688, 7
        %v690 = vsub.s32 %v687, %v689
        %v691 = vrot.slane %v602, %v690
        %v693 = vunpack.c.l.s4 1983009808
        %v694 = vunpack.c.0.s8 %v693
        %v695 = vlaneseq
        %v696 = vshrl.u32 %v695, 7
        %v697 = vsub.s32 %v694, %v696
        %v698 = vrot.slane %v684, %v697
        %v699 = vcombine.high %v691, %v691
        %vm700 = vcmask 31744
        %v702 = vsel %vm700, %v667, 0
        %v705 = vsel %vm700, %v668, 0
        %v708 = vsel %vm700, %v669, 0
        %v711 = vsel %vm700, %v670, 0
        %v714 = vsel %vm700, %v671, 0
        %v717 = vsel %vm700, %v672, 0
        %v720 = vsel %vm700, %v673, 0
        %v723 = vsel %vm700, %v674, 0
        %v726 = vsel %vm700, %v675, 0
        %v729 = vsel %vm700, %v676, 0
        %v732 = vsel %vm700, %v677, 0
        %v735 = vsel %vm700, %v678, 0
        %v738 = vsel %vm700, %v679, 0
        %v741 = vsel %vm700, %v680, 0
        %v744 = vsel %vm700, %v681, 0
        %v747 = vsel %vm700, %v682, 0
        %vm749 = vcmask 1041408
        %v751 = vsel %vm749, %v691, 0
        %v754 = vsel %vm749, %v699, 0
        %v757 = vsel %vm749, %v698, 0
        %759 = vmatprep.subr.bf16.mxu0 %v754
        %760 = vmatpush1.bf16.msra.mxu0 %v751
        %761 = vmatprep.subr.bf16.mxu0 0
        %762 = vmatpush1.bf16.msra.mxu0 0
        %763 = vmatprep.subr.bf16.mxu0 0
        %764 = vmatpush1.bf16.msra.mxu0 0
        %765 = vmatprep.subr.bf16.mxu0 0
        %766 = vmatpush1.bf16.msra.mxu0 0
        %767 = vmatprep.subr.bf16.mxu0 0
        %768 = vmatpush1.bf16.msra.mxu0 0
        %769 = vmatprep.subr.bf16.mxu0 0
        %770 = vmatpush1.bf16.msra.mxu0 0
        %771 = vmatprep.subr.bf16.mxu0 0
        %772 = vmatpush1.bf16.msra.mxu0 0
        %773 = vmatprep.subr.bf16.mxu0 0
        %774 = vmatpush1.bf16.msra.mxu0 0
        %775 = vmatprep.subr.bf16.mxu0 0
        %776 = vmatpush1.bf16.msra.mxu0 0
        %777 = vmatprep.subr.bf16.mxu0 0
        %778 = vmatpush1.bf16.msra.mxu0 0
        %779 = vmatprep.subr.bf16.mxu0 0
        %780 = vmatpush1.bf16.msra.mxu0 0
        %781 = vmatprep.subr.bf16.mxu0 0
        %782 = vmatpush1.bf16.msra.mxu0 0
        %783 = vmatprep.subr.bf16.mxu0 0
        %784 = vmatpush1.bf16.msra.mxu0 0
        %785 = vmatprep.subr.bf16.mxu0 0
        %786 = vmatpush1.bf16.msra.mxu0 0
        %787 = vmatprep.subr.bf16.mxu0 0
        %788 = vmatpush1.bf16.msra.mxu0 0
        %789 = vmatprep.subr.bf16.mxu0 0
        %790 = vmatpush1.bf16.msra.mxu0 0
        %791 = vmatprep.mubr.bf16.mxu0 0
        %792 = vmatmul.mubr.bf16.gmra.mrb[0].mxu0 %v702
        %v793 = vpop.f32.mrb[0].mxu0
        %v794 = vadd.f32 0.0, %v793
        %v795 = vpop.f32.mrb[0].mxu0
        %v796 = vadd.f32 0.0, %v795
        %v797 = vpop.f32.mrb[0].mxu0
        %v798 = vadd.f32 0.0, %v797
        %v799 = vpop.f32.mrb[0].mxu0
        %v800 = vadd.f32 0.0, %v799
        %801 = vmatprep.mubr.bf16.mxu0 0
        %802 = vmatmul.mubr.bf16.gmra.mrb[0].mxu0 %v705
        %v803 = vpop.f32.mrb[0].mxu0
        %v804 = vadd.f32 0.0, %v803
        %v805 = vpop.f32.mrb[0].mxu0
        %v806 = vadd.f32 0.0, %v805
        %v807 = vpop.f32.mrb[0].mxu0
        %v808 = vadd.f32 0.0, %v807
        %v809 = vpop.f32.mrb[0].mxu0
        %v810 = vadd.f32 0.0, %v809
        %811 = vmatprep.mubr.bf16.mxu0 0
        %812 = vmatmul.mubr.bf16.gmra.mrb[0].mxu0 %v708
        %v813 = vpop.f32.mrb[0].mxu0
        %v814 = vadd.f32 0.0, %v813
        %v815 = vpop.f32.mrb[0].mxu0
        %v816 = vadd.f32 0.0, %v815
        %v817 = vpop.f32.mrb[0].mxu0
        %v818 = vadd.f32 0.0, %v817
        %v819 = vpop.f32.mrb[0].mxu0
        %v820 = vadd.f32 0.0, %v819
        %821 = vmatprep.mubr.bf16.mxu0 0
        %822 = vmatmul.mubr.bf16.gmra.mrb[0].mxu0 %v711
        %v823 = vpop.f32.mrb[0].mxu0
        %v824 = vadd.f32 0.0, %v823
        %v825 = vpop.f32.mrb[0].mxu0
        %v826 = vadd.f32 0.0, %v825
        %v827 = vpop.f32.mrb[0].mxu0
        %v828 = vadd.f32 0.0, %v827
        %v829 = vpop.f32.mrb[0].mxu0
        %v830 = vadd.f32 0.0, %v829
        %831 = vmatprep.mubr.bf16.mxu0 0
        %832 = vmatmul.mubr.bf16.gmra.mrb[0].mxu0 %v714
        %v833 = vpop.f32.mrb[0].mxu0
        %v834 = vadd.f32 0.0, %v833
        %v835 = vpop.f32.mrb[0].mxu0
        %v836 = vadd.f32 0.0, %v835
        %v837 = vpop.f32.mrb[0].mxu0
        %v838 = vadd.f32 0.0, %v837
        %v839 = vpop.f32.mrb[0].mxu0
        %v840 = vadd.f32 0.0, %v839
        %841 = vmatprep.mubr.bf16.mxu0 0
        %842 = vmatmul.mubr.bf16.gmra.mrb[0].mxu0 %v717
        %v843 = vpop.f32.mrb[0].mxu0
        %v844 = vadd.f32 0.0, %v843
        %v845 = vpop.f32.mrb[0].mxu0
        %v846 = vadd.f32 0.0, %v845
        %v847 = vpop.f32.mrb[0].mxu0
        %v848 = vadd.f32 0.0, %v847
        %v849 = vpop.f32.mrb[0].mxu0
        %v850 = vadd.f32 0.0, %v849
        %851 = vmatprep.mubr.bf16.mxu0 0
        %852 = vmatmul.mubr.bf16.gmra.mrb[0].mxu0 %v720
        %v853 = vpop.f32.mrb[0].mxu0
        %v854 = vadd.f32 0.0, %v853
        %v855 = vpop.f32.mrb[0].mxu0
        %v856 = vadd.f32 0.0, %v855
        %v857 = vpop.f32.mrb[0].mxu0
        %v858 = vadd.f32 0.0, %v857
        %v859 = vpop.f32.mrb[0].mxu0
        %v860 = vadd.f32 0.0, %v859
        %861 = vmatprep.mubr.bf16.mxu0 0
        %862 = vmatmul.mubr.bf16.gmra.mrb[0].mxu0 %v723
        %v863 = vpop.f32.mrb[0].mxu0
        %v864 = vadd.f32 0.0, %v863
        %v865 = vpop.f32.mrb[0].mxu0
        %v866 = vadd.f32 0.0, %v865
        %v867 = vpop.f32.mrb[0].mxu0
        %v868 = vadd.f32 0.0, %v867
        %v869 = vpop.f32.mrb[0].mxu0
        %v870 = vadd.f32 0.0, %v869
        %871 = vmatprep.mubr.bf16.mxu0 0
        %872 = vmatmul.mubr.bf16.gmra.mrb[0].mxu0 %v726
        %v873 = vpop.f32.mrb[0].mxu0
        %v874 = vadd.f32 0.0, %v873
        %v875 = vpop.f32.mrb[0].mxu0
        %v876 = vadd.f32 0.0, %v875
        %v877 = vpop.f32.mrb[0].mxu0
        %v878 = vadd.f32 0.0, %v877
        %v879 = vpop.f32.mrb[0].mxu0
        %v880 = vadd.f32 0.0, %v879
        %881 = vmatprep.mubr.bf16.mxu0 0
        %882 = vmatmul.mubr.bf16.gmra.mrb[0].mxu0 %v729
        %v883 = vpop.f32.mrb[0].mxu0
        %v884 = vadd.f32 0.0, %v883
        %v885 = vpop.f32.mrb[0].mxu0
        %v886 = vadd.f32 0.0, %v885
        %v887 = vpop.f32.mrb[0].mxu0
        %v888 = vadd.f32 0.0, %v887
        %v889 = vpop.f32.mrb[0].mxu0
        %v890 = vadd.f32 0.0, %v889
        %891 = vmatprep.mubr.bf16.mxu0 0
        %892 = vmatmul.mubr.bf16.gmra.mrb[0].mxu0 %v732
        %v893 = vpop.f32.mrb[0].mxu0
        %v894 = vadd.f32 0.0, %v893
        %v895 = vpop.f32.mrb[0].mxu0
        %v896 = vadd.f32 0.0, %v895
        %v897 = vpop.f32.mrb[0].mxu0
        %v898 = vadd.f32 0.0, %v897
        %v899 = vpop.f32.mrb[0].mxu0
        %v900 = vadd.f32 0.0, %v899
        %901 = vmatprep.mubr.bf16.mxu0 0
        %902 = vmatmul.mubr.bf16.gmra.mrb[0].mxu0 %v735
        %v903 = vpop.f32.mrb[0].mxu0
        %v904 = vadd.f32 0.0, %v903
        %v905 = vpop.f32.mrb[0].mxu0
        %v906 = vadd.f32 0.0, %v905
        %v907 = vpop.f32.mrb[0].mxu0
        %v908 = vadd.f32 0.0, %v907
        %v909 = vpop.f32.mrb[0].mxu0
        %v910 = vadd.f32 0.0, %v909
        %911 = vmatprep.mubr.bf16.mxu0 0
        %912 = vmatmul.mubr.bf16.gmra.mrb[0].mxu0 %v738
        %v913 = vpop.f32.mrb[0].mxu0
        %v914 = vadd.f32 0.0, %v913
        %v915 = vpop.f32.mrb[0].mxu0
        %v916 = vadd.f32 0.0, %v915
        %v917 = vpop.f32.mrb[0].mxu0
        %v918 = vadd.f32 0.0, %v917
        %v919 = vpop.f32.mrb[0].mxu0
        %v920 = vadd.f32 0.0, %v919
        %921 = vmatprep.mubr.bf16.mxu0 0
        %922 = vmatmul.mubr.bf16.gmra.mrb[0].mxu0 %v741
        %v923 = vpop.f32.mrb[0].mxu0
        %v924 = vadd.f32 0.0, %v923
        %v925 = vpop.f32.mrb[0].mxu0
        %v926 = vadd.f32 0.0, %v925
        %v927 = vpop.f32.mrb[0].mxu0
        %v928 = vadd.f32 0.0, %v927
        %v929 = vpop.f32.mrb[0].mxu0
        %v930 = vadd.f32 0.0, %v929
        %931 = vmatprep.mubr.bf16.mxu0 0
        %932 = vmatmul.mubr.bf16.gmra.mrb[0].mxu0 %v744
        %v933 = vpop.f32.mrb[0].mxu0
        %v934 = vadd.f32 0.0, %v933
        %v935 = vpop.f32.mrb[0].mxu0
        %v936 = vadd.f32 0.0, %v935
        %v937 = vpop.f32.mrb[0].mxu0
        %v938 = vadd.f32 0.0, %v937
        %v939 = vpop.f32.mrb[0].mxu0
        %v940 = vadd.f32 0.0, %v939
        %941 = vmatprep.mubr.bf16.mxu0 0
        %942 = vmatmul.mubr.bf16.gmra.mrb[0].mxu0 %v747
        %v943 = vpop.f32.mrb[0].mxu0
        %v944 = vadd.f32 0.0, %v943
        %v945 = vpop.f32.mrb[0].mxu0
        %v946 = vadd.f32 0.0, %v945
        %v947 = vpop.f32.mrb[0].mxu0
        %v948 = vadd.f32 0.0, %v947
        %v949 = vpop.f32.mrb[0].mxu0
        %v950 = vadd.f32 0.0, %v949
        %951 = vdwg.mxu0
        %952 = vmatprep.subr.bf16.mxu0 0
        %953 = vmatpush1.bf16.msra.mxu0 %v757
        %954 = vmatprep.subr.bf16.mxu0 0
        %955 = vmatpush1.bf16.msra.mxu0 0
        %956 = vmatprep.subr.bf16.mxu0 0
        %957 = vmatpush1.bf16.msra.mxu0 0
        %958 = vmatprep.subr.bf16.mxu0 0
        %959 = vmatpush1.bf16.msra.mxu0 0
        %960 = vmatprep.subr.bf16.mxu0 0
        %961 = vmatpush1.bf16.msra.mxu0 0
        %962 = vmatprep.subr.bf16.mxu0 0
        %963 = vmatpush1.bf16.msra.mxu0 0
        %964 = vmatprep.subr.bf16.mxu0 0
        %965 = vmatpush1.bf16.msra.mxu0 0
        %966 = vmatprep.subr.bf16.mxu0 0
        %967 = vmatpush1.bf16.msra.mxu0 0
        %968 = vmatprep.subr.bf16.mxu0 0
        %969 = vmatpush1.bf16.msra.mxu0 0
        %970 = vmatprep.subr.bf16.mxu0 0
        %971 = vmatpush1.bf16.msra.mxu0 0
        %972 = vmatprep.subr.bf16.mxu0 0
        %973 = vmatpush1.bf16.msra.mxu0 0
        %974 = vmatprep.subr.bf16.mxu0 0
        %975 = vmatpush1.bf16.msra.mxu0 0
        %976 = vmatprep.subr.bf16.mxu0 0
        %977 = vmatpush1.bf16.msra.mxu0 0
        %978 = vmatprep.subr.bf16.mxu0 0
        %979 = vmatpush1.bf16.msra.mxu0 0
        %980 = vmatprep.subr.bf16.mxu0 0
        %981 = vmatpush1.bf16.msra.mxu0 0
        %982 = vmatprep.subr.bf16.mxu0 0
        %983 = vmatpush1.bf16.msra.mxu0 0
        %984 = vmatprep.mubr.bf16.mxu0 0
        %985 = vmatmul.mubr.bf16.gmra.mrb[0].mxu0 %v702
        %v986 = vpop.f32.mrb[0].mxu0
        %v987 = vadd.f32 0.0, %v986
        %v988 = vpop.f32.mrb[0].mxu0
        %v989 = vpop.f32.mrb[0].mxu0
        %v990 = vadd.f32 0.0, %v989
        %v991 = vpop.f32.mrb[0].mxu0
        %992 = vmatprep.mubr.bf16.mxu0 0
        %993 = vmatmul.mubr.bf16.gmra.mrb[0].mxu0 %v705
        %v994 = vpop.f32.mrb[0].mxu0
        %v995 = vadd.f32 0.0, %v994
        %v996 = vpop.f32.mrb[0].mxu0
        %v997 = vpop.f32.mrb[0].mxu0
        %v998 = vadd.f32 0.0, %v997
        %v999 = vpop.f32.mrb[0].mxu0
        %1000 = vmatprep.mubr.bf16.mxu0 0
        %1001 = vmatmul.mubr.bf16.gmra.mrb[0].mxu0 %v708
        %v1002 = vpop.f32.mrb[0].mxu0
        %v1003 = vadd.f32 0.0, %v1002
        %v1004 = vpop.f32.mrb[0].mxu0
        %v1005 = vpop.f32.mrb[0].mxu0
        %v1006 = vadd.f32 0.0, %v1005
        %v1007 = vpop.f32.mrb[0].mxu0
        %1008 = vmatprep.mubr.bf16.mxu0 0
        %1009 = vmatmul.mubr.bf16.gmra.mrb[0].mxu0 %v711
        %v1010 = vpop.f32.mrb[0].mxu0
        %v1011 = vadd.f32 0.0, %v1010
        %v1012 = vpop.f32.mrb[0].mxu0
        %v1013 = vpop.f32.mrb[0].mxu0
        %v1014 = vadd.f32 0.0, %v1013
        %v1015 = vpop.f32.mrb[0].mxu0
        %1016 = vmatprep.mubr.bf16.mxu0 0
        %1017 = vmatmul.mubr.bf16.gmra.mrb[0].mxu0 %v714
        %v1018 = vpop.f32.mrb[0].mxu0
        %v1019 = vadd.f32 0.0, %v1018
        %v1020 = vpop.f32.mrb[0].mxu0
        %v1021 = vpop.f32.mrb[0].mxu0
        %v1022 = vadd.f32 0.0, %v1021
        %v1023 = vpop.f32.mrb[0].mxu0
        %1024 = vmatprep.mubr.bf16.mxu0 0
        %1025 = vmatmul.mubr.bf16.gmra.mrb[0].mxu0 %v717
        %v1026 = vpop.f32.mrb[0].mxu0
        %v1027 = vadd.f32 0.0, %v1026
        %v1028 = vpop.f32.mrb[0].mxu0
        %v1029 = vpop.f32.mrb[0].mxu0
        %v1030 = vadd.f32 0.0, %v1029
        %v1031 = vpop.f32.mrb[0].mxu0
        %1032 = vmatprep.mubr.bf16.mxu0 0
        %1033 = vmatmul.mubr.bf16.gmra.mrb[0].mxu0 %v720
        %v1034 = vpop.f32.mrb[0].mxu0
        %v1035 = vadd.f32 0.0, %v1034
        %v1036 = vpop.f32.mrb[0].mxu0
        %v1037 = vpop.f32.mrb[0].mxu0
        %v1038 = vadd.f32 0.0, %v1037
        %v1039 = vpop.f32.mrb[0].mxu0
        %1040 = vmatprep.mubr.bf16.mxu0 0
        %1041 = vmatmul.mubr.bf16.gmra.mrb[0].mxu0 %v723
        %v1042 = vpop.f32.mrb[0].mxu0
        %v1043 = vadd.f32 0.0, %v1042
        %v1044 = vpop.f32.mrb[0].mxu0
        %v1045 = vpop.f32.mrb[0].mxu0
        %v1046 = vadd.f32 0.0, %v1045
        %v1047 = vpop.f32.mrb[0].mxu0
        %1048 = vmatprep.mubr.bf16.mxu0 0
        %1049 = vmatmul.mubr.bf16.gmra.mrb[0].mxu0 %v726
        %v1050 = vpop.f32.mrb[0].mxu0
        %v1051 = vadd.f32 0.0, %v1050
        %v1052 = vpop.f32.mrb[0].mxu0
        %v1053 = vpop.f32.mrb[0].mxu0
        %v1054 = vadd.f32 0.0, %v1053
        %v1055 = vpop.f32.mrb[0].mxu0
        %1056 = vmatprep.mubr.bf16.mxu0 0
        %1057 = vmatmul.mubr.bf16.gmra.mrb[0].mxu0 %v729
        %v1058 = vpop.f32.mrb[0].mxu0
        %v1059 = vadd.f32 0.0, %v1058
        %v1060 = vpop.f32.mrb[0].mxu0
        %v1061 = vpop.f32.mrb[0].mxu0
        %v1062 = vadd.f32 0.0, %v1061
        %v1063 = vpop.f32.mrb[0].mxu0
        %1064 = vmatprep.mubr.bf16.mxu0 0
        %1065 = vmatmul.mubr.bf16.gmra.mrb[0].mxu0 %v732
        %v1066 = vpop.f32.mrb[0].mxu0
        %v1067 = vadd.f32 0.0, %v1066
        %v1068 = vpop.f32.mrb[0].mxu0
        %v1069 = vpop.f32.mrb[0].mxu0
        %v1070 = vadd.f32 0.0, %v1069
        %v1071 = vpop.f32.mrb[0].mxu0
        %1072 = vmatprep.mubr.bf16.mxu0 0
        %1073 = vmatmul.mubr.bf16.gmra.mrb[0].mxu0 %v735
        %v1074 = vpop.f32.mrb[0].mxu0
        %v1075 = vadd.f32 0.0, %v1074
        %v1076 = vpop.f32.mrb[0].mxu0
        %v1077 = vpop.f32.mrb[0].mxu0
        %v1078 = vadd.f32 0.0, %v1077
        %v1079 = vpop.f32.mrb[0].mxu0
        %1080 = vmatprep.mubr.bf16.mxu0 0
        %1081 = vmatmul.mubr.bf16.gmra.mrb[0].mxu0 %v738
        %v1082 = vpop.f32.mrb[0].mxu0
        %v1083 = vadd.f32 0.0, %v1082
        %v1084 = vpop.f32.mrb[0].mxu0
        %v1085 = vpop.f32.mrb[0].mxu0
        %v1086 = vadd.f32 0.0, %v1085
        %v1087 = vpop.f32.mrb[0].mxu0
        %1088 = vmatprep.mubr.bf16.mxu0 0
        %1089 = vmatmul.mubr.bf16.gmra.mrb[0].mxu0 %v741
        %v1090 = vpop.f32.mrb[0].mxu0
        %v1091 = vadd.f32 0.0, %v1090
        %v1092 = vpop.f32.mrb[0].mxu0
        %v1093 = vpop.f32.mrb[0].mxu0
        %v1094 = vadd.f32 0.0, %v1093
        %v1095 = vpop.f32.mrb[0].mxu0
        %1096 = vmatprep.mubr.bf16.mxu0 0
        %1097 = vmatmul.mubr.bf16.gmra.mrb[0].mxu0 %v744
        %v1098 = vpop.f32.mrb[0].mxu0
        %v1099 = vadd.f32 0.0, %v1098
        %v1100 = vpop.f32.mrb[0].mxu0
        %v1101 = vpop.f32.mrb[0].mxu0
        %v1102 = vadd.f32 0.0, %v1101
        %v1103 = vpop.f32.mrb[0].mxu0
        %1104 = vmatprep.mubr.bf16.mxu0 0
        %1105 = vmatmul.mubr.bf16.gmra.mrb[0].mxu0 %v747
        %v1106 = vpop.f32.mrb[0].mxu0
        %v1107 = vadd.f32 0.0, %v1106
        %v1108 = vpop.f32.mrb[0].mxu0
        %v1109 = vpop.f32.mrb[0].mxu0
        %v1110 = vadd.f32 0.0, %v1109
        %v1111 = vpop.f32.mrb[0].mxu0
        %1112 = vdwg.mxu0
        %v1113 = vadd.f32 %v474, %v794
        %v1114 = vadd.f32 %v475, %v796
        %v1115 = vadd.f32 %v476, %v987
        %v1116 = vadd.f32 %v477, %v798
        %v1117 = vadd.f32 %v478, %v800
        %v1118 = vadd.f32 %v479, %v990
        %v1119 = vadd.f32 %v480, %v804
        %v1120 = vadd.f32 %v481, %v806
        %v1121 = vadd.f32 %v482, %v995
        %v1122 = vadd.f32 %v483, %v808
        %v1123 = vadd.f32 %v484, %v810
        %v1124 = vadd.f32 %v485, %v998
        %v1125 = vadd.f32 %v486, %v814
        %v1126 = vadd.f32 %v487, %v816
        %v1127 = vadd.f32 %v488, %v1003
        %v1128 = vadd.f32 %v489, %v818
        %v1129 = vadd.f32 %v490, %v820
        %v1130 = vadd.f32 %v491, %v1006
        %v1131 = vadd.f32 %v492, %v824
        %v1132 = vadd.f32 %v493, %v826
        %v1133 = vadd.f32 %v494, %v1011
        %v1134 = vadd.f32 %v495, %v828
        %v1135 = vadd.f32 %v496, %v830
        %v1136 = vadd.f32 %v497, %v1014
        %v1137 = vadd.f32 %v498, %v834
        %v1138 = vadd.f32 %v499, %v836
        %v1139 = vadd.f32 %v500, %v1019
        %v1140 = vadd.f32 %v501, %v838
        %v1141 = vadd.f32 %v502, %v840
        %v1142 = vadd.f32 %v503, %v1022
        %v1143 = vadd.f32 %v504, %v844
        %v1144 = vadd.f32 %v505, %v846
        %v1145 = vadd.f32 %v506, %v1027
        %v1146 = vadd.f32 %v507, %v848
        %v1147 = vadd.f32 %v508, %v850
        %v1148 = vadd.f32 %v509, %v1030
        %v1149 = vadd.f32 %v510, %v854
        %v1150 = vadd.f32 %v511, %v856
        %v1151 = vadd.f32 %v512, %v1035
        %v1152 = vadd.f32 %v513, %v858
        %v1153 = vadd.f32 %v514, %v860
        %v1154 = vadd.f32 %v515, %v1038
        %v1155 = vadd.f32 %v516, %v864
        %v1156 = vadd.f32 %v517, %v866
        %v1157 = vadd.f32 %v518, %v1043
        %v1158 = vadd.f32 %v519, %v868
        %v1159 = vadd.f32 %v520, %v870
        %v1160 = vadd.f32 %v521, %v1046
        %v1161 = vadd.f32 %v522, %v874
        %v1162 = vadd.f32 %v523, %v876
        %v1163 = vadd.f32 %v524, %v1051
        %v1164 = vadd.f32 %v525, %v878
        %v1165 = vadd.f32 %v526, %v880
        %v1166 = vadd.f32 %v527, %v1054
        %v1167 = vadd.f32 %v528, %v884
        %v1168 = vadd.f32 %v529, %v886
        %v1169 = vadd.f32 %v530, %v1059
        %v1170 = vadd.f32 %v531, %v888
        %v1171 = vadd.f32 %v532, %v890
        %v1172 = vadd.f32 %v533, %v1062
        %v1173 = vadd.f32 %v534, %v894
        %v1174 = vadd.f32 %v535, %v896
        %v1175 = vadd.f32 %v536, %v1067
        %v1176 = vadd.f32 %v537, %v898
        %v1177 = vadd.f32 %v538, %v900
        %v1178 = vadd.f32 %v539, %v1070
        %v1179 = vadd.f32 %v540, %v904
        %v1180 = vadd.f32 %v541, %v906
        %v1181 = vadd.f32 %v542, %v1075
        %v1182 = vadd.f32 %v543, %v908
        %v1183 = vadd.f32 %v544, %v910
        %v1184 = vadd.f32 %v545, %v1078
        %v1185 = vadd.f32 %v546, %v914
        %v1186 = vadd.f32 %v547, %v916
        %v1187 = vadd.f32 %v548, %v1083
        %v1188 = vadd.f32 %v549, %v918
        %v1189 = vadd.f32 %v550, %v920
        %v1190 = vadd.f32 %v551, %v1086
        %v1191 = vadd.f32 %v552, %v924
        %v1192 = vadd.f32 %v553, %v926
        %v1193 = vadd.f32 %v554, %v1091
        %v1194 = vadd.f32 %v555, %v928
        %v1195 = vadd.f32 %v556, %v930
        %v1196 = vadd.f32 %v557, %v1094
        %v1197 = vadd.f32 %v558, %v934
        %v1198 = vadd.f32 %v559, %v936
        %v1199 = vadd.f32 %v560, %v1099
        %v1200 = vadd.f32 %v561, %v938
        %v1201 = vadd.f32 %v562, %v940
        %v1202 = vadd.f32 %v563, %v1102
        %v1203 = vadd.f32 %v564, %v944
        %v1204 = vadd.f32 %v565, %v946
        %v1205 = vadd.f32 %v566, %v1107
        %v1206 = vadd.f32 %v567, %v948
        %v1207 = vadd.f32 %v568, %v950
        %v1208 = vadd.f32 %v569, %v1110
        %1209 = vst [vmem:[#allocation2] sm:$0xff] %v1113
        %1210 = vst [vmem:[#allocation2 + $0x8] sm:$0xff] %v1114
        %1211 = vst [vmem:[#allocation2 + $0x10] sm:$0xff] %v1115
        %1212 = vst [vmem:[#allocation2 + $0x18] sm:$0xff] %v1116
        %1213 = vst [vmem:[#allocation2 + $0x20] sm:$0xff] %v1117
        %1214 = vst [vmem:[#allocation2 + $0x28] sm:$0xff] %v1118
        %1215 = vst [vmem:[#allocation2 + $0x30] sm:$0xff] %v1119
        %1216 = vst [vmem:[#allocation2 + $0x38] sm:$0xff] %v1120
        %1217 = vst [vmem:[#allocation2 + $0x40] sm:$0xff] %v1121
        %1218 = vst [vmem:[#allocation2 + $0x48] sm:$0xff] %v1122
        %1219 = vst [vmem:[#allocation2 + $0x50] sm:$0xff] %v1123
        %1220 = vst [vmem:[#allocation2 + $0x58] sm:$0xff] %v1124
        %1221 = vst [vmem:[#allocation2 + $0x60] sm:$0xff] %v1125
        %1222 = vst [vmem:[#allocation2 + $0x68] sm:$0xff] %v1126
        %1223 = vst [vmem:[#allocation2 + $0x70] sm:$0xff] %v1127
        %1224 = vst [vmem:[#allocation2 + $0x78] sm:$0xff] %v1128
        %1225 = vst [vmem:[#allocation2 + $0x80] sm:$0xff] %v1129
        %1226 = vst [vmem:[#allocation2 + $0x88] sm:$0xff] %v1130
        %1227 = vst [vmem:[#allocation2 + $0x90] sm:$0xff] %v1131
        %1228 = vst [vmem:[#allocation2 + $0x98] sm:$0xff] %v1132
        %1229 = vst [vmem:[#allocation2 + $0xa0] sm:$0xff] %v1133
        %1230 = vst [vmem:[#allocation2 + $0xa8] sm:$0xff] %v1134
        %1231 = vst [vmem:[#allocation2 + $0xb0] sm:$0xff] %v1135
        %1232 = vst [vmem:[#allocation2 + $0xb8] sm:$0xff] %v1136
        %1233 = vst [vmem:[#allocation2 + $0xc0] sm:$0xff] %v1137
        %1234 = vst [vmem:[#allocation2 + $0xc8] sm:$0xff] %v1138
        %1235 = vst [vmem:[#allocation2 + $0xd0] sm:$0xff] %v1139
        %1236 = vst [vmem:[#allocation2 + $0xd8] sm:$0xff] %v1140
        %1237 = vst [vmem:[#allocation2 + $0xe0] sm:$0xff] %v1141
        %1238 = vst [vmem:[#allocation2 + $0xe8] sm:$0xff] %v1142
        %1239 = vst [vmem:[#allocation2 + $0xf0] sm:$0xff] %v1143
        %1240 = vst [vmem:[#allocation2 + $0xf8] sm:$0xff] %v1144
        %1241 = vst [vmem:[#allocation2 + $0x100] sm:$0xff] %v1145
        %1242 = vst [vmem:[#allocation2 + $0x108] sm:$0xff] %v1146
        %1243 = vst [vmem:[#allocation2 + $0x110] sm:$0xff] %v1147
        %1244 = vst [vmem:[#allocation2 + $0x118] sm:$0xff] %v1148
        %1245 = vst [vmem:[#allocation2 + $0x120] sm:$0xff] %v1149
        %1246 = vst [vmem:[#allocation2 + $0x128] sm:$0xff] %v1150
        %1247 = vst [vmem:[#allocation2 + $0x130] sm:$0xff] %v1151
        %1248 = vst [vmem:[#allocation2 + $0x138] sm:$0xff] %v1152
        %1249 = vst [vmem:[#allocation2 + $0x140] sm:$0xff] %v1153
        %1250 = vst [vmem:[#allocation2 + $0x148] sm:$0xff] %v1154
        %1251 = vst [vmem:[#allocation2 + $0x150] sm:$0xff] %v1155
        %1252 = vst [vmem:[#allocation2 + $0x158] sm:$0xff] %v1156
        %1253 = vst [vmem:[#allocation2 + $0x160] sm:$0xff] %v1157
        %1254 = vst [vmem:[#allocation2 + $0x168] sm:$0xff] %v1158
        %1255 = vst [vmem:[#allocation2 + $0x170] sm:$0xff] %v1159
        %1256 = vst [vmem:[#allocation2 + $0x178] sm:$0xff] %v1160
        %1257 = vst [vmem:[#allocation2 + $0x180] sm:$0xff] %v1161
        %1258 = vst [vmem:[#allocation2 + $0x188] sm:$0xff] %v1162
        %1259 = vst [vmem:[#allocation2 + $0x190] sm:$0xff] %v1163
        %1260 = vst [vmem:[#allocation2 + $0x198] sm:$0xff] %v1164
        %1261 = vst [vmem:[#allocation2 + $0x1a0] sm:$0xff] %v1165
        %1262 = vst [vmem:[#allocation2 + $0x1a8] sm:$0xff] %v1166
        %1263 = vst [vmem:[#allocation2 + $0x1b0] sm:$0xff] %v1167
        %1264 = vst [vmem:[#allocation2 + $0x1b8] sm:$0xff] %v1168
        %1265 = vst [vmem:[#allocation2 + $0x1c0] sm:$0xff] %v1169
        %1266 = vst [vmem:[#allocation2 + $0x1c8] sm:$0xff] %v1170
        %1267 = vst [vmem:[#allocation2 + $0x1d0] sm:$0xff] %v1171
        %1268 = vst [vmem:[#allocation2 + $0x1d8] sm:$0xff] %v1172
        %1269 = vst [vmem:[#allocation2 + $0x1e0] sm:$0xff] %v1173
        %1270 = vst [vmem:[#allocation2 + $0x1e8] sm:$0xff] %v1174
        %1271 = vst [vmem:[#allocation2 + $0x1f0] sm:$0xff] %v1175
        %1272 = vst [vmem:[#allocation2 + $0x1f8] sm:$0xff] %v1176
        %1273 = vst [vmem:[#allocation2 + $0x200] sm:$0xff] %v1177
        %1274 = vst [vmem:[#allocation2 + $0x208] sm:$0xff] %v1178
        %1275 = vst [vmem:[#allocation2 + $0x210] sm:$0xff] %v1179
        %1276 = vst [vmem:[#allocation2 + $0x218] sm:$0xff] %v1180
        %1277 = vst [vmem:[#allocation2 + $0x220] sm:$0xff] %v1181
        %1278 = vst [vmem:[#allocation2 + $0x228] sm:$0xff] %v1182
        %1279 = vst [vmem:[#allocation2 + $0x230] sm:$0xff] %v1183
        %1280 = vst [vmem:[#allocation2 + $0x238] sm:$0xff] %v1184
        %1281 = vst [vmem:[#allocation2 + $0x240] sm:$0xff] %v1185
        %1282 = vst [vmem:[#allocation2 + $0x248] sm:$0xff] %v1186
        %1283 = vst [vmem:[#allocation2 + $0x250] sm:$0xff] %v1187
        %1284 = vst [vmem:[#allocation2 + $0x258] sm:$0xff] %v1188
        %1285 = vst [vmem:[#allocation2 + $0x260] sm:$0xff] %v1189
        %1286 = vst [vmem:[#allocation2 + $0x268] sm:$0xff] %v1190
        %1287 = vst [vmem:[#allocation2 + $0x270] sm:$0xff] %v1191
        %1288 = vst [vmem:[#allocation2 + $0x278] sm:$0xff] %v1192
        %1289 = vst [vmem:[#allocation2 + $0x280] sm:$0xff] %v1193
        %1290 = vst [vmem:[#allocation2 + $0x288] sm:$0xff] %v1194
        %1291 = vst [vmem:[#allocation2 + $0x290] sm:$0xff] %v1195
        %1292 = vst [vmem:[#allocation2 + $0x298] sm:$0xff] %v1196
        %1293 = vst [vmem:[#allocation2 + $0x2a0] sm:$0xff] %v1197
        %1294 = vst [vmem:[#allocation2 + $0x2a8] sm:$0xff] %v1198
        %1295 = vst [vmem:[#allocation2 + $0x2b0] sm:$0xff] %v1199
        %1296 = vst [vmem:[#allocation2 + $0x2b8] sm:$0xff] %v1200
        %1297 = vst [vmem:[#allocation2 + $0x2c0] sm:$0xff] %v1201
        %1298 = vst [vmem:[#allocation2 + $0x2c8] sm:$0xff] %v1202
        %1299 = vst [vmem:[#allocation2 + $0x2d0] sm:$0xff] %v1203
        %1300 = vst [vmem:[#allocation2 + $0x2d8] sm:$0xff] %v1204
        %1301 = vst [vmem:[#allocation2 + $0x2e0] sm:$0xff] %v1205
        %1302 = vst [vmem:[#allocation2 + $0x2e8] sm:$0xff] %v1206
        %1303 = vst [vmem:[#allocation2 + $0x2f0] sm:$0xff] %v1207
        %1304 = vst [vmem:[#allocation2 + $0x2f8] sm:$0xff] %v1208
        // Predicated region
        $region49: #{tpu_custom_call.1} parent=39 // pred_check
          %p1305 = pneg %p353
        $region50: #{tpu_custom_call.1} parent=39 // pred_check_branch
          %1307 = sbr.rel (%p1305) target = $region52
        $region51: #{tpu_custom_call.1} parent=39 // pred_region
          %v1308 = vld [vmem:[#allocation2] sm:$0xff]
          %v1309 = vld [vmem:[#allocation2 + $0x8] sm:$0xff]
          %v1310 = vld [vmem:[#allocation2 + $0x10] sm:$0xff]
          %v1311 = vld [vmem:[#allocation2 + $0x18] sm:$0xff]
          %v1312 = vld [vmem:[#allocation2 + $0x20] sm:$0xff]
          %v1313 = vld [vmem:[#allocation2 + $0x28] sm:$0xff]
          %v1314 = vld [vmem:[#allocation2 + $0x30] sm:$0xff]
          %v1315 = vld [vmem:[#allocation2 + $0x38] sm:$0xff]
          %v1316 = vld [vmem:[#allocation2 + $0x40] sm:$0xff]
          %v1317 = vld [vmem:[#allocation2 + $0x48] sm:$0xff]
          %v1318 = vld [vmem:[#allocation2 + $0x50] sm:$0xff]
          %v1319 = vld [vmem:[#allocation2 + $0x58] sm:$0xff]
          %v1320 = vld [vmem:[#allocation2 + $0x60] sm:$0xff]
          %v1321 = vld [vmem:[#allocation2 + $0x68] sm:$0xff]
          %v1322 = vld [vmem:[#allocation2 + $0x70] sm:$0xff]
          %v1323 = vld [vmem:[#allocation2 + $0x78] sm:$0xff]
          %v1324 = vld [vmem:[#allocation2 + $0x80] sm:$0xff]
          %v1325 = vld [vmem:[#allocation2 + $0x88] sm:$0xff]
          %v1326 = vld [vmem:[#allocation2 + $0x90] sm:$0xff]
          %v1327 = vld [vmem:[#allocation2 + $0x98] sm:$0xff]
          %v1328 = vld [vmem:[#allocation2 + $0xa0] sm:$0xff]
          %v1329 = vld [vmem:[#allocation2 + $0xa8] sm:$0xff]
          %v1330 = vld [vmem:[#allocation2 + $0xb0] sm:$0xff]
          %v1331 = vld [vmem:[#allocation2 + $0xb8] sm:$0xff]
          %v1332 = vld [vmem:[#allocation2 + $0xc0] sm:$0xff]
          %v1333 = vld [vmem:[#allocation2 + $0xc8] sm:$0xff]
          %v1334 = vld [vmem:[#allocation2 + $0xd0] sm:$0xff]
          %v1335 = vld [vmem:[#allocation2 + $0xd8] sm:$0xff]
          %v1336 = vld [vmem:[#allocation2 + $0xe0] sm:$0xff]
          %v1337 = vld [vmem:[#allocation2 + $0xe8] sm:$0xff]
          %v1338 = vld [vmem:[#allocation2 + $0xf0] sm:$0xff]
          %v1339 = vld [vmem:[#allocation2 + $0xf8] sm:$0xff]
          %v1340 = vld [vmem:[#allocation2 + $0x100] sm:$0xff]
          %v1341 = vld [vmem:[#allocation2 + $0x108] sm:$0xff]
          %v1342 = vld [vmem:[#allocation2 + $0x110] sm:$0xff]
          %v1343 = vld [vmem:[#allocation2 + $0x118] sm:$0xff]
          %v1344 = vld [vmem:[#allocation2 + $0x120] sm:$0xff]
          %v1345 = vld [vmem:[#allocation2 + $0x128] sm:$0xff]
          %v1346 = vld [vmem:[#allocation2 + $0x130] sm:$0xff]
          %v1347 = vld [vmem:[#allocation2 + $0x138] sm:$0xff]
          %v1348 = vld [vmem:[#allocation2 + $0x140] sm:$0xff]
          %v1349 = vld [vmem:[#allocation2 + $0x148] sm:$0xff]
          %v1350 = vld [vmem:[#allocation2 + $0x150] sm:$0xff]
          %v1351 = vld [vmem:[#allocation2 + $0x158] sm:$0xff]
          %v1352 = vld [vmem:[#allocation2 + $0x160] sm:$0xff]
          %v1353 = vld [vmem:[#allocation2 + $0x168] sm:$0xff]
          %v1354 = vld [vmem:[#allocation2 + $0x170] sm:$0xff]
          %v1355 = vld [vmem:[#allocation2 + $0x178] sm:$0xff]
          %v1356 = vld [vmem:[#allocation2 + $0x180] sm:$0xff]
          %v1357 = vld [vmem:[#allocation2 + $0x188] sm:$0xff]
          %v1358 = vld [vmem:[#allocation2 + $0x190] sm:$0xff]
          %v1359 = vld [vmem:[#allocation2 + $0x198] sm:$0xff]
          %v1360 = vld [vmem:[#allocation2 + $0x1a0] sm:$0xff]
          %v1361 = vld [vmem:[#allocation2 + $0x1a8] sm:$0xff]
          %v1362 = vld [vmem:[#allocation2 + $0x1b0] sm:$0xff]
          %v1363 = vld [vmem:[#allocation2 + $0x1b8] sm:$0xff]
          %v1364 = vld [vmem:[#allocation2 + $0x1c0] sm:$0xff]
          %v1365 = vld [vmem:[#allocation2 + $0x1c8] sm:$0xff]
          %v1366 = vld [vmem:[#allocation2 + $0x1d0] sm:$0xff]
          %v1367 = vld [vmem:[#allocation2 + $0x1d8] sm:$0xff]
          %v1368 = vld [vmem:[#allocation2 + $0x1e0] sm:$0xff]
          %v1369 = vld [vmem:[#allocation2 + $0x1e8] sm:$0xff]
          %v1370 = vld [vmem:[#allocation2 + $0x1f0] sm:$0xff]
          %v1371 = vld [vmem:[#allocation2 + $0x1f8] sm:$0xff]
          %v1372 = vld [vmem:[#allocation2 + $0x200] sm:$0xff]
          %v1373 = vld [vmem:[#allocation2 + $0x208] sm:$0xff]
          %v1374 = vld [vmem:[#allocation2 + $0x210] sm:$0xff]
          %v1375 = vld [vmem:[#allocation2 + $0x218] sm:$0xff]
          %v1376 = vld [vmem:[#allocation2 + $0x220] sm:$0xff]
          %v1377 = vld [vmem:[#allocation2 + $0x228] sm:$0xff]
          %v1378 = vld [vmem:[#allocation2 + $0x230] sm:$0xff]
          %v1379 = vld [vmem:[#allocation2 + $0x238] sm:$0xff]
          %v1380 = vld [vmem:[#allocation2 + $0x240] sm:$0xff]
          %v1381 = vld [vmem:[#allocation2 + $0x248] sm:$0xff]
          %v1382 = vld [vmem:[#allocation2 + $0x250] sm:$0xff]
          %v1383 = vld [vmem:[#allocation2 + $0x258] sm:$0xff]
          %v1384 = vld [vmem:[#allocation2 + $0x260] sm:$0xff]
          %v1385 = vld [vmem:[#allocation2 + $0x268] sm:$0xff]
          %v1386 = vld [vmem:[#allocation2 + $0x270] sm:$0xff]
          %v1387 = vld [vmem:[#allocation2 + $0x278] sm:$0xff]
          %v1388 = vld [vmem:[#allocation2 + $0x280] sm:$0xff]
          %v1389 = vld [vmem:[#allocation2 + $0x288] sm:$0xff]
          %v1390 = vld [vmem:[#allocation2 + $0x290] sm:$0xff]
          %v1391 = vld [vmem:[#allocation2 + $0x298] sm:$0xff]
          %v1392 = vld [vmem:[#allocation2 + $0x2a0] sm:$0xff]
          %v1393 = vld [vmem:[#allocation2 + $0x2a8] sm:$0xff]
          %v1394 = vld [vmem:[#allocation2 + $0x2b0] sm:$0xff]
          %v1395 = vld [vmem:[#allocation2 + $0x2b8] sm:$0xff]
          %v1396 = vld [vmem:[#allocation2 + $0x2c0] sm:$0xff]
          %v1397 = vld [vmem:[#allocation2 + $0x2c8] sm:$0xff]
          %v1398 = vld [vmem:[#allocation2 + $0x2d0] sm:$0xff]
          %v1399 = vld [vmem:[#allocation2 + $0x2d8] sm:$0xff]
          %v1400 = vld [vmem:[#allocation2 + $0x2e0] sm:$0xff]
          %v1401 = vld [vmem:[#allocation2 + $0x2e8] sm:$0xff]
          %v1402 = vld [vmem:[#allocation2 + $0x2f0] sm:$0xff]
          %v1403 = vld [vmem:[#allocation2 + $0x2f8] sm:$0xff]
          %v1404 = vld [vmem:[%s2] sm:$0x7]
          %v1406 = vlaneseq
          %v1407 = vshrl.u32 %v1406, 7
          %v1408 = vsub.s32 0, %v1407
          %v1409 = vrot.slane %v1404, %v1408
          %v1410 = vlaneseq
          %v1411 = vshrl.u32 %v1410, 7
          %v1412 = vsub.s32 1, %v1411
          %v1413 = vrot.slane %v1404, %v1412
          %v1414 = vlaneseq
          %v1415 = vshrl.u32 %v1414, 7
          %v1416 = vsub.s32 2, %v1415
          %v1417 = vrot.slane %v1404, %v1416
          %v1421 = vmul.f32 %v1308, %v1409
          %v1422 = vmul.f32 %v1309, %v1413
          %v1423 = vmul.f32 %v1310, %v1417
          %v1424 = vmul.f32 %v1311, %v1409
          %v1425 = vmul.f32 %v1312, %v1413
          %v1426 = vmul.f32 %v1313, %v1417
          %v1427 = vmul.f32 %v1314, %v1409
          %v1428 = vmul.f32 %v1315, %v1413
          %v1429 = vmul.f32 %v1316, %v1417
          %v1430 = vmul.f32 %v1317, %v1409
          %v1431 = vmul.f32 %v1318, %v1413
          %v1432 = vmul.f32 %v1319, %v1417
          %v1433 = vmul.f32 %v1320, %v1409
          %v1434 = vmul.f32 %v1321, %v1413
          %v1435 = vmul.f32 %v1322, %v1417
          %v1436 = vmul.f32 %v1323, %v1409
          %v1437 = vmul.f32 %v1324, %v1413
          %v1438 = vmul.f32 %v1325, %v1417
          %v1439 = vmul.f32 %v1326, %v1409
          %v1440 = vmul.f32 %v1327, %v1413
          %v1441 = vmul.f32 %v1328, %v1417
          %v1442 = vmul.f32 %v1329, %v1409
          %v1443 = vmul.f32 %v1330, %v1413
          %v1444 = vmul.f32 %v1331, %v1417
          %v1445 = vmul.f32 %v1332, %v1409
          %v1446 = vmul.f32 %v1333, %v1413
          %v1447 = vmul.f32 %v1334, %v1417
          %v1448 = vmul.f32 %v1335, %v1409
          %v1449 = vmul.f32 %v1336, %v1413
          %v1450 = vmul.f32 %v1337, %v1417
          %v1451 = vmul.f32 %v1338, %v1409
          %v1452 = vmul.f32 %v1339, %v1413
          %v1453 = vmul.f32 %v1340, %v1417
          %v1454 = vmul.f32 %v1341, %v1409
          %v1455 = vmul.f32 %v1342, %v1413
          %v1456 = vmul.f32 %v1343, %v1417
          %v1457 = vmul.f32 %v1344, %v1409
          %v1458 = vmul.f32 %v1345, %v1413
          %v1459 = vmul.f32 %v1346, %v1417
          %v1460 = vmul.f32 %v1347, %v1409
          %v1461 = vmul.f32 %v1348, %v1413
          %v1462 = vmul.f32 %v1349, %v1417
          %v1463 = vmul.f32 %v1350, %v1409
          %v1464 = vmul.f32 %v1351, %v1413
          %v1465 = vmul.f32 %v1352, %v1417
          %v1466 = vmul.f32 %v1353, %v1409
          %v1467 = vmul.f32 %v1354, %v1413
          %v1468 = vmul.f32 %v1355, %v1417
          %v1469 = vmul.f32 %v1356, %v1409
          %v1470 = vmul.f32 %v1357, %v1413
          %v1471 = vmul.f32 %v1358, %v1417
          %v1472 = vmul.f32 %v1359, %v1409
          %v1473 = vmul.f32 %v1360, %v1413
          %v1474 = vmul.f32 %v1361, %v1417
          %v1475 = vmul.f32 %v1362, %v1409
          %v1476 = vmul.f32 %v1363, %v1413
          %v1477 = vmul.f32 %v1364, %v1417
          %v1478 = vmul.f32 %v1365, %v1409
          %v1479 = vmul.f32 %v1366, %v1413
          %v1480 = vmul.f32 %v1367, %v1417
          %v1481 = vmul.f32 %v1368, %v1409
          %v1482 = vmul.f32 %v1369, %v1413
          %v1483 = vmul.f32 %v1370, %v1417
          %v1484 = vmul.f32 %v1371, %v1409
          %v1485 = vmul.f32 %v1372, %v1413
          %v1486 = vmul.f32 %v1373, %v1417
          %v1487 = vmul.f32 %v1374, %v1409
          %v1488 = vmul.f32 %v1375, %v1413
          %v1489 = vmul.f32 %v1376, %v1417
          %v1490 = vmul.f32 %v1377, %v1409
          %v1491 = vmul.f32 %v1378, %v1413
          %v1492 = vmul.f32 %v1379, %v1417
          %v1493 = vmul.f32 %v1380, %v1409
          %v1494 = vmul.f32 %v1381, %v1413
          %v1495 = vmul.f32 %v1382, %v1417
          %v1496 = vmul.f32 %v1383, %v1409
          %v1497 = vmul.f32 %v1384, %v1413
          %v1498 = vmul.f32 %v1385, %v1417
          %v1499 = vmul.f32 %v1386, %v1409
          %v1500 = vmul.f32 %v1387, %v1413
          %v1501 = vmul.f32 %v1388, %v1417
          %v1502 = vmul.f32 %v1389, %v1409
          %v1503 = vmul.f32 %v1390, %v1413
          %v1504 = vmul.f32 %v1391, %v1417
          %v1505 = vmul.f32 %v1392, %v1409
          %v1506 = vmul.f32 %v1393, %v1413
          %v1507 = vmul.f32 %v1394, %v1417
          %v1508 = vmul.f32 %v1395, %v1409
          %v1509 = vmul.f32 %v1396, %v1413
          %v1510 = vmul.f32 %v1397, %v1417
          %v1511 = vmul.f32 %v1398, %v1409
          %v1512 = vmul.f32 %v1399, %v1413
          %v1513 = vmul.f32 %v1400, %v1417
          %v1514 = vmul.f32 %v1401, %v1409
          %v1515 = vmul.f32 %v1402, %v1413
          %v1516 = vmul.f32 %v1403, %v1417
          %v1517 = vld [vmem:[%s3] sm:$0x7]
          %v1519 = vlaneseq
          %v1520 = vshrl.u32 %v1519, 7
          %v1521 = vsub.s32 0, %v1520
          %v1522 = vrot.slane %v1517, %v1521
          %v1523 = vlaneseq
          %v1524 = vshrl.u32 %v1523, 7
          %v1525 = vsub.s32 1, %v1524
          %v1526 = vrot.slane %v1517, %v1525
          %v1527 = vlaneseq
          %v1528 = vshrl.u32 %v1527, 7
          %v1529 = vsub.s32 2, %v1528
          %v1530 = vrot.slane %v1517, %v1529
          %v1534 = vadd.f32 %v1421, %v1522
          %v1535 = vadd.f32 %v1422, %v1526
          %v1536 = vadd.f32 %v1423, %v1530
          %v1537 = vadd.f32 %v1424, %v1522
          %v1538 = vadd.f32 %v1425, %v1526
          %v1539 = vadd.f32 %v1426, %v1530
          %v1540 = vadd.f32 %v1427, %v1522
          %v1541 = vadd.f32 %v1428, %v1526
          %v1542 = vadd.f32 %v1429, %v1530
          %v1543 = vadd.f32 %v1430, %v1522
          %v1544 = vadd.f32 %v1431, %v1526
          %v1545 = vadd.f32 %v1432, %v1530
          %v1546 = vadd.f32 %v1433, %v1522
          %v1547 = vadd.f32 %v1434, %v1526
          %v1548 = vadd.f32 %v1435, %v1530
          %v1549 = vadd.f32 %v1436, %v1522
          %v1550 = vadd.f32 %v1437, %v1526
          %v1551 = vadd.f32 %v1438, %v1530
          %v1552 = vadd.f32 %v1439, %v1522
          %v1553 = vadd.f32 %v1440, %v1526
          %v1554 = vadd.f32 %v1441, %v1530
          %v1555 = vadd.f32 %v1442, %v1522
          %v1556 = vadd.f32 %v1443, %v1526
          %v1557 = vadd.f32 %v1444, %v1530
          %v1558 = vadd.f32 %v1445, %v1522
          %v1559 = vadd.f32 %v1446, %v1526
          %v1560 = vadd.f32 %v1447, %v1530
          %v1561 = vadd.f32 %v1448, %v1522
          %v1562 = vadd.f32 %v1449, %v1526
          %v1563 = vadd.f32 %v1450, %v1530
          %v1564 = vadd.f32 %v1451, %v1522
          %v1565 = vadd.f32 %v1452, %v1526
          %v1566 = vadd.f32 %v1453, %v1530
          %v1567 = vadd.f32 %v1454, %v1522
          %v1568 = vadd.f32 %v1455, %v1526
          %v1569 = vadd.f32 %v1456, %v1530
          %v1570 = vadd.f32 %v1457, %v1522
          %v1571 = vadd.f32 %v1458, %v1526
          %v1572 = vadd.f32 %v1459, %v1530
          %v1573 = vadd.f32 %v1460, %v1522
          %v1574 = vadd.f32 %v1461, %v1526
          %v1575 = vadd.f32 %v1462, %v1530
          %v1576 = vadd.f32 %v1463, %v1522
          %v1577 = vadd.f32 %v1464, %v1526
          %v1578 = vadd.f32 %v1465, %v1530
          %v1579 = vadd.f32 %v1466, %v1522
          %v1580 = vadd.f32 %v1467, %v1526
          %v1581 = vadd.f32 %v1468, %v1530
          %v1582 = vadd.f32 %v1469, %v1522
          %v1583 = vadd.f32 %v1470, %v1526
          %v1584 = vadd.f32 %v1471, %v1530
          %v1585 = vadd.f32 %v1472, %v1522
          %v1586 = vadd.f32 %v1473, %v1526
          %v1587 = vadd.f32 %v1474, %v1530
          %v1588 = vadd.f32 %v1475, %v1522
          %v1589 = vadd.f32 %v1476, %v1526
          %v1590 = vadd.f32 %v1477, %v1530
          %v1591 = vadd.f32 %v1478, %v1522
          %v1592 = vadd.f32 %v1479, %v1526
          %v1593 = vadd.f32 %v1480, %v1530
          %v1594 = vadd.f32 %v1481, %v1522
          %v1595 = vadd.f32 %v1482, %v1526
          %v1596 = vadd.f32 %v1483, %v1530
          %v1597 = vadd.f32 %v1484, %v1522
          %v1598 = vadd.f32 %v1485, %v1526
          %v1599 = vadd.f32 %v1486, %v1530
          %v1600 = vadd.f32 %v1487, %v1522
          %v1601 = vadd.f32 %v1488, %v1526
          %v1602 = vadd.f32 %v1489, %v1530
          %v1603 = vadd.f32 %v1490, %v1522
          %v1604 = vadd.f32 %v1491, %v1526
          %v1605 = vadd.f32 %v1492, %v1530
          %v1606 = vadd.f32 %v1493, %v1522
          %v1607 = vadd.f32 %v1494, %v1526
          %v1608 = vadd.f32 %v1495, %v1530
          %v1609 = vadd.f32 %v1496, %v1522
          %v1610 = vadd.f32 %v1497, %v1526
          %v1611 = vadd.f32 %v1498, %v1530
          %v1612 = vadd.f32 %v1499, %v1522
          %v1613 = vadd.f32 %v1500, %v1526
          %v1614 = vadd.f32 %v1501, %v1530
          %v1615 = vadd.f32 %v1502, %v1522
          %v1616 = vadd.f32 %v1503, %v1526
          %v1617 = vadd.f32 %v1504, %v1530
          %v1618 = vadd.f32 %v1505, %v1522
          %v1619 = vadd.f32 %v1506, %v1526
          %v1620 = vadd.f32 %v1507, %v1530
          %v1621 = vadd.f32 %v1508, %v1522
          %v1622 = vadd.f32 %v1509, %v1526
          %v1623 = vadd.f32 %v1510, %v1530
          %v1624 = vadd.f32 %v1511, %v1522
          %v1625 = vadd.f32 %v1512, %v1526
          %v1626 = vadd.f32 %v1513, %v1530
          %v1627 = vadd.f32 %v1514, %v1522
          %v1628 = vadd.f32 %v1515, %v1526
          %v1629 = vadd.f32 %v1516, %v1530
          %v1630 = vmax.f32 %v1534, 0.0
          %v1631 = vmax.f32 %v1535, 0.0
          %v1632 = vmax.f32 %v1536, 0.0
          %v1633 = vmax.f32 %v1537, 0.0
          %v1634 = vmax.f32 %v1538, 0.0
          %v1635 = vmax.f32 %v1539, 0.0
          %v1636 = vmax.f32 %v1540, 0.0
          %v1637 = vmax.f32 %v1541, 0.0
          %v1638 = vmax.f32 %v1542, 0.0
          %v1639 = vmax.f32 %v1543, 0.0
          %v1640 = vmax.f32 %v1544, 0.0
          %v1641 = vmax.f32 %v1545, 0.0
          %v1642 = vmax.f32 %v1546, 0.0
          %v1643 = vmax.f32 %v1547, 0.0
          %v1644 = vmax.f32 %v1548, 0.0
          %v1645 = vmax.f32 %v1549, 0.0
          %v1646 = vmax.f32 %v1550, 0.0
          %v1647 = vmax.f32 %v1551, 0.0
          %v1648 = vmax.f32 %v1552, 0.0
          %v1649 = vmax.f32 %v1553, 0.0
          %v1650 = vmax.f32 %v1554, 0.0
          %v1651 = vmax.f32 %v1555, 0.0
          %v1652 = vmax.f32 %v1556, 0.0
          %v1653 = vmax.f32 %v1557, 0.0
          %v1654 = vmax.f32 %v1558, 0.0
          %v1655 = vmax.f32 %v1559, 0.0
          %v1656 = vmax.f32 %v1560, 0.0
          %v1657 = vmax.f32 %v1561, 0.0
          %v1658 = vmax.f32 %v1562, 0.0
          %v1659 = vmax.f32 %v1563, 0.0
          %v1660 = vmax.f32 %v1564, 0.0
          %v1661 = vmax.f32 %v1565, 0.0
          %v1662 = vmax.f32 %v1566, 0.0
          %v1663 = vmax.f32 %v1567, 0.0
          %v1664 = vmax.f32 %v1568, 0.0
          %v1665 = vmax.f32 %v1569, 0.0
          %v1666 = vmax.f32 %v1570, 0.0
          %v1667 = vmax.f32 %v1571, 0.0
          %v1668 = vmax.f32 %v1572, 0.0
          %v1669 = vmax.f32 %v1573, 0.0
          %v1670 = vmax.f32 %v1574, 0.0
          %v1671 = vmax.f32 %v1575, 0.0
          %v1672 = vmax.f32 %v1576, 0.0
          %v1673 = vmax.f32 %v1577, 0.0
          %v1674 = vmax.f32 %v1578, 0.0
          %v1675 = vmax.f32 %v1579, 0.0
          %v1676 = vmax.f32 %v1580, 0.0
          %v1677 = vmax.f32 %v1581, 0.0
          %v1678 = vmax.f32 %v1582, 0.0
          %v1679 = vmax.f32 %v1583, 0.0
          %v1680 = vmax.f32 %v1584, 0.0
          %v1681 = vmax.f32 %v1585, 0.0
          %v1682 = vmax.f32 %v1586, 0.0
          %v1683 = vmax.f32 %v1587, 0.0
          %v1684 = vmax.f32 %v1588, 0.0
          %v1685 = vmax.f32 %v1589, 0.0
          %v1686 = vmax.f32 %v1590, 0.0
          %v1687 = vmax.f32 %v1591, 0.0
          %v1688 = vmax.f32 %v1592, 0.0
          %v1689 = vmax.f32 %v1593, 0.0
          %v1690 = vmax.f32 %v1594, 0.0
          %v1691 = vmax.f32 %v1595, 0.0
          %v1692 = vmax.f32 %v1596, 0.0
          %v1693 = vmax.f32 %v1597, 0.0
          %v1694 = vmax.f32 %v1598, 0.0
          %v1695 = vmax.f32 %v1599, 0.0
          %v1696 = vmax.f32 %v1600, 0.0
          %v1697 = vmax.f32 %v1601, 0.0
          %v1698 = vmax.f32 %v1602, 0.0
          %v1699 = vmax.f32 %v1603, 0.0
          %v1700 = vmax.f32 %v1604, 0.0
          %v1701 = vmax.f32 %v1605, 0.0
          %v1702 = vmax.f32 %v1606, 0.0
          %v1703 = vmax.f32 %v1607, 0.0
          %v1704 = vmax.f32 %v1608, 0.0
          %v1705 = vmax.f32 %v1609, 0.0
          %v1706 = vmax.f32 %v1610, 0.0
          %v1707 = vmax.f32 %v1611, 0.0
          %v1708 = vmax.f32 %v1612, 0.0
          %v1709 = vmax.f32 %v1613, 0.0
          %v1710 = vmax.f32 %v1614, 0.0
          %v1711 = vmax.f32 %v1615, 0.0
          %v1712 = vmax.f32 %v1616, 0.0
          %v1713 = vmax.f32 %v1617, 0.0
          %v1714 = vmax.f32 %v1618, 0.0
          %v1715 = vmax.f32 %v1619, 0.0
          %v1716 = vmax.f32 %v1620, 0.0
          %v1717 = vmax.f32 %v1621, 0.0
          %v1718 = vmax.f32 %v1622, 0.0
          %v1719 = vmax.f32 %v1623, 0.0
          %v1720 = vmax.f32 %v1624, 0.0
          %v1721 = vmax.f32 %v1625, 0.0
          %v1722 = vmax.f32 %v1626, 0.0
          %v1723 = vmax.f32 %v1627, 0.0
          %v1724 = vmax.f32 %v1628, 0.0
          %v1725 = vmax.f32 %v1629, 0.0
          %1726 = vst [vmem:[%s319] sm:$0xff] %v1632
          %1727 = vst [vmem:[%s319 + $0x8] sm:$0xff] %v1635
          %1728 = vst [vmem:[%s319 + $0x10] sm:$0xff] %v1638
          %1729 = vst [vmem:[%s319 + $0x18] sm:$0xff] %v1641
          %1730 = vst [vmem:[%s319 + $0x20] sm:$0xff] %v1644
          %1731 = vst [vmem:[%s319 + $0x28] sm:$0xff] %v1647
          %1732 = vst [vmem:[%s319 + $0x30] sm:$0xff] %v1650
          %1733 = vst [vmem:[%s319 + $0x38] sm:$0xff] %v1653
          %1734 = vst [vmem:[%s319 + $0x40] sm:$0xff] %v1656
          %1735 = vst [vmem:[%s319 + $0x48] sm:$0xff] %v1659
          %1736 = vst [vmem:[%s319 + $0x50] sm:$0xff] %v1662
          %1737 = vst [vmem:[%s319 + $0x58] sm:$0xff] %v1665
          %1738 = vst [vmem:[%s319 + $0x60] sm:$0xff] %v1668
          %1739 = vst [vmem:[%s319 + $0x68] sm:$0xff] %v1671
          %1740 = vst [vmem:[%s319 + $0x70] sm:$0xff] %v1674
          %1741 = vst [vmem:[%s319 + $0x78] sm:$0xff] %v1677
          %1742 = vst [vmem:[%s319 + $0x80] sm:$0xff] %v1680
          %1743 = vst [vmem:[%s319 + $0x88] sm:$0xff] %v1683
          %1744 = vst [vmem:[%s319 + $0x90] sm:$0xff] %v1686
          %1745 = vst [vmem:[%s319 + $0x98] sm:$0xff] %v1689
          %1746 = vst [vmem:[%s319 + $0xa0] sm:$0xff] %v1692
          %1747 = vst [vmem:[%s319 + $0xa8] sm:$0xff] %v1695
          %1748 = vst [vmem:[%s319 + $0xb0] sm:$0xff] %v1698
          %1749 = vst [vmem:[%s319 + $0xb8] sm:$0xff] %v1701
          %1750 = vst [vmem:[%s319 + $0xc0] sm:$0xff] %v1704
          %1751 = vst [vmem:[%s319 + $0xc8] sm:$0xff] %v1707
          %1752 = vst [vmem:[%s319 + $0xd0] sm:$0xff] %v1710
          %1753 = vst [vmem:[%s319 + $0xd8] sm:$0xff] %v1713
          %1754 = vst [vmem:[%s319 + $0xe0] sm:$0xff] %v1716
          %1755 = vst [vmem:[%s319 + $0xe8] sm:$0xff] %v1719
          %1756 = vst [vmem:[%s319 + $0xf0] sm:$0xff] %v1722
          %1757 = vst [vmem:[%s319 + $0xf8] sm:$0xff] %v1725
          %v1758 = vld [vmem:[%s326] sm:$0xff]
          %v1759 = vld [vmem:[%s326 + $0x8] sm:$0xff]
          %v1760 = vld [vmem:[%s326 + $0x10] sm:$0xff]
          %v1761 = vld [vmem:[%s326 + $0x18] sm:$0xff]
          %v1762 = vld [vmem:[%s326 + $0x20] sm:$0xff]
          %v1763 = vld [vmem:[%s326 + $0x28] sm:$0xff]
          %v1764 = vld [vmem:[%s326 + $0x30] sm:$0xff]
          %v1765 = vld [vmem:[%s326 + $0x38] sm:$0xff]
          %v1766 = vld [vmem:[%s326 + $0x40] sm:$0xff]
          %v1767 = vld [vmem:[%s326 + $0x48] sm:$0xff]
          %v1768 = vld [vmem:[%s326 + $0x50] sm:$0xff]
          %v1769 = vld [vmem:[%s326 + $0x58] sm:$0xff]
          %v1770 = vld [vmem:[%s326 + $0x60] sm:$0xff]
          %v1771 = vld [vmem:[%s326 + $0x68] sm:$0xff]
          %v1772 = vld [vmem:[%s326 + $0x70] sm:$0xff]
          %v1773 = vld [vmem:[%s326 + $0x78] sm:$0xff]
          %v1774 = vld [vmem:[%s349] sm:$0xff]
          %v1775 = vld [vmem:[%s349 + $0x8] sm:$0xff]
          %v1776 = vld [vmem:[%s349 + $0x10] sm:$0xff]
          %v1777 = vld [vmem:[%s349 + $0x18] sm:$0xff]
          %v1778 = vld [vmem:[%s349 + $0x20] sm:$0xff]
          %v1779 = vld [vmem:[%s349 + $0x28] sm:$0xff]
          %v1780 = vld [vmem:[%s349 + $0x30] sm:$0xff]
          %v1781 = vld [vmem:[%s349 + $0x38] sm:$0xff]
          %v1782 = vpack.c.bf16 %v1633, %v1630
          %v1783 = vpack.c.bf16 %v1634, %v1631
          %v1784 = vpack.c.bf16 %v1639, %v1636
          %v1785 = vpack.c.bf16 %v1640, %v1637
          %v1786 = vpack.c.bf16 %v1645, %v1642
          %v1787 = vpack.c.bf16 %v1646, %v1643
          %v1788 = vpack.c.bf16 %v1651, %v1648
          %v1789 = vpack.c.bf16 %v1652, %v1649
          %v1790 = vpack.c.bf16 %v1657, %v1654
          %v1791 = vpack.c.bf16 %v1658, %v1655
          %v1792 = vpack.c.bf16 %v1663, %v1660
          %v1793 = vpack.c.bf16 %v1664, %v1661
          %v1794 = vpack.c.bf16 %v1669, %v1666
          %v1795 = vpack.c.bf16 %v1670, %v1667
          %v1796 = vpack.c.bf16 %v1675, %v1672
          %v1797 = vpack.c.bf16 %v1676, %v1673
          %v1798 = vpack.c.bf16 %v1681, %v1678
          %v1799 = vpack.c.bf16 %v1682, %v1679
          %v1800 = vpack.c.bf16 %v1687, %v1684
          %v1801 = vpack.c.bf16 %v1688, %v1685
          %v1802 = vpack.c.bf16 %v1693, %v1690
          %v1803 = vpack.c.bf16 %v1694, %v1691
          %v1804 = vpack.c.bf16 %v1699, %v1696
          %v1805 = vpack.c.bf16 %v1700, %v1697
          %v1806 = vpack.c.bf16 %v1705, %v1702
          %v1807 = vpack.c.bf16 %v1706, %v1703
          %v1808 = vpack.c.bf16 %v1711, %v1708
          %v1809 = vpack.c.bf16 %v1712, %v1709
          %v1810 = vpack.c.bf16 %v1717, %v1714
          %v1811 = vpack.c.bf16 %v1718, %v1715
          %v1812 = vpack.c.bf16 %v1723, %v1720
          %v1813 = vpack.c.bf16 %v1724, %v1721
          %v1822 = vunpack.c.l.b16 %v1774
          %v1823 = vunpack.c.h.b16 %v1774
          %v1824 = vunpack.c.l.b16 %v1775
          %v1825 = vunpack.c.h.b16 %v1775
          %v1826 = vunpack.c.l.b16 %v1776
          %v1827 = vunpack.c.h.b16 %v1776
          %v1828 = vunpack.c.l.b16 %v1777
          %v1829 = vunpack.c.h.b16 %v1777
          %v1830 = vunpack.c.l.b16 %v1778
          %v1831 = vunpack.c.h.b16 %v1778
          %v1832 = vunpack.c.l.b16 %v1779
          %v1833 = vunpack.c.h.b16 %v1779
          %v1834 = vunpack.c.l.b16 %v1780
          %v1835 = vunpack.c.h.b16 %v1780
          %v1836 = vunpack.c.l.b16 %v1781
          %v1837 = vunpack.c.h.b16 %v1781
          %v1838 = vpack.c.b16 %v1824, %v1822
          %v1839 = vpack.c.b16 %v1825, %v1823
          %v1840 = vpack.c.b16 %v1828, %v1826
          %v1841 = vpack.c.b16 %v1829, %v1827
          %v1842 = vpack.c.b16 %v1832, %v1830
          %v1843 = vpack.c.b16 %v1833, %v1831
          %v1844 = vpack.c.b16 %v1836, %v1834
          %v1845 = vpack.c.b16 %v1837, %v1835
          %1854 = vmatprep.subr.bf16.mxu0 %v1783
          %1855 = vmatpush1.bf16.msra.mxu0 %v1782
          %1856 = vmatprep.subr.bf16.mxu0 %v1785
          %1857 = vmatpush1.bf16.msra.mxu0 %v1784
          %1858 = vmatprep.subr.bf16.mxu0 %v1787
          %1859 = vmatpush1.bf16.msra.mxu0 %v1786
          %1860 = vmatprep.subr.bf16.mxu0 %v1789
          %1861 = vmatpush1.bf16.msra.mxu0 %v1788
          %1862 = vmatprep.subr.bf16.mxu0 %v1791
          %1863 = vmatpush1.bf16.msra.mxu0 %v1790
          %1864 = vmatprep.subr.bf16.mxu0 %v1793
          %1865 = vmatpush1.bf16.msra.mxu0 %v1792
          %1866 = vmatprep.subr.bf16.mxu0 %v1795
          %1867 = vmatpush1.bf16.msra.mxu0 %v1794
          %1868 = vmatprep.subr.bf16.mxu0 %v1797
          %1869 = vmatpush1.bf16.msra.mxu0 %v1796
          %1870 = vmatprep.subr.bf16.mxu0 %v1799
          %1871 = vmatpush1.bf16.msra.mxu0 %v1798
          %1872 = vmatprep.subr.bf16.mxu0 %v1801
          %1873 = vmatpush1.bf16.msra.mxu0 %v1800
          %1874 = vmatprep.subr.bf16.mxu0 %v1803
          %1875 = vmatpush1.bf16.msra.mxu0 %v1802
          %1876 = vmatprep.subr.bf16.mxu0 %v1805
          %1877 = vmatpush1.bf16.msra.mxu0 %v1804
          %1878 = vmatprep.subr.bf16.mxu0 %v1807
          %1879 = vmatpush1.bf16.msra.mxu0 %v1806
          %1880 = vmatprep.subr.bf16.mxu0 %v1809
          %1881 = vmatpush1.bf16.msra.mxu0 %v1808
          %1882 = vmatprep.subr.bf16.mxu0 %v1811
          %1883 = vmatpush1.bf16.msra.mxu0 %v1810
          %1884 = vmatprep.subr.bf16.mxu0 %v1813
          %1885 = vmatpush1.bf16.msra.mxu0 %v1812
          %1886 = vmatprep.mubr.bf16.mxu0 %v1839
          %1887 = vmatmul.mubr.bf16.gmra.mrb[0].mxu0 %v1838
          %v1888 = vpop.f32.mrb[0].mxu0
          %v1889 = vadd.f32 0.0, %v1888
          %v1890 = vpop.f32.mrb[0].mxu0
          %v1891 = vadd.f32 0.0, %v1890
          %v1892 = vpop.f32.mrb[0].mxu0
          %v1893 = vadd.f32 0.0, %v1892
          %v1894 = vpop.f32.mrb[0].mxu0
          %v1895 = vadd.f32 0.0, %v1894
          %1896 = vmatprep.mubr.bf16.mxu0 %v1841
          %1897 = vmatmul.mubr.bf16.gmra.mrb[0].mxu0 %v1840
          %v1898 = vpop.f32.mrb[0].mxu0
          %v1899 = vadd.f32 0.0, %v1898
          %v1900 = vpop.f32.mrb[0].mxu0
          %v1901 = vadd.f32 0.0, %v1900
          %v1902 = vpop.f32.mrb[0].mxu0
          %v1903 = vadd.f32 0.0, %v1902
          %v1904 = vpop.f32.mrb[0].mxu0
          %v1905 = vadd.f32 0.0, %v1904
          %1906 = vmatprep.mubr.bf16.mxu0 %v1843
          %1907 = vmatmul.mubr.bf16.gmra.mrb[0].mxu0 %v1842
          %v1908 = vpop.f32.mrb[0].mxu0
          %v1909 = vadd.f32 0.0, %v1908
          %v1910 = vpop.f32.mrb[0].mxu0
          %v1911 = vadd.f32 0.0, %v1910
          %v1912 = vpop.f32.mrb[0].mxu0
          %v1913 = vadd.f32 0.0, %v1912
          %v1914 = vpop.f32.mrb[0].mxu0
          %v1915 = vadd.f32 0.0, %v1914
          %1916 = vmatprep.mubr.bf16.mxu0 %v1845
          %1917 = vmatmul.mubr.bf16.gmra.mrb[0].mxu0 %v1844
          %v1918 = vpop.f32.mrb[0].mxu0
          %v1919 = vadd.f32 0.0, %v1918
          %v1920 = vpop.f32.mrb[0].mxu0
          %v1921 = vadd.f32 0.0, %v1920
          %v1922 = vpop.f32.mrb[0].mxu0
          %v1923 = vadd.f32 0.0, %v1922
          %v1924 = vpop.f32.mrb[0].mxu0
          %v1925 = vadd.f32 0.0, %v1924
          %1926 = vdwg.mxu0
          %v1927 = vadd.f32 %v1758, %v1889
          %v1928 = vadd.f32 %v1759, %v1891
          %v1929 = vadd.f32 %v1760, %v1893
          %v1930 = vadd.f32 %v1761, %v1895
          %v1931 = vadd.f32 %v1762, %v1899
          %v1932 = vadd.f32 %v1763, %v1901
          %v1933 = vadd.f32 %v1764, %v1903
          %v1934 = vadd.f32 %v1765, %v1905
          %v1935 = vadd.f32 %v1766, %v1909
          %v1936 = vadd.f32 %v1767, %v1911
          %v1937 = vadd.f32 %v1768, %v1913
          %v1938 = vadd.f32 %v1769, %v1915
          %v1939 = vadd.f32 %v1770, %v1919
          %v1940 = vadd.f32 %v1771, %v1921
          %v1941 = vadd.f32 %v1772, %v1923
          %v1942 = vadd.f32 %v1773, %v1925
          %1943 = vst [vmem:[%s326] sm:$0xff] %v1927
          %1944 = vst [vmem:[%s326 + $0x8] sm:$0xff] %v1928
          %1945 = vst [vmem:[%s326 + $0x10] sm:$0xff] %v1929
          %1946 = vst [vmem:[%s326 + $0x18] sm:$0xff] %v1930
          %1947 = vst [vmem:[%s326 + $0x20] sm:$0xff] %v1931
          %1948 = vst [vmem:[%s326 + $0x28] sm:$0xff] %v1932
          %1949 = vst [vmem:[%s326 + $0x30] sm:$0xff] %v1933
          %1950 = vst [vmem:[%s326 + $0x38] sm:$0xff] %v1934
          %1951 = vst [vmem:[%s326 + $0x40] sm:$0xff] %v1935
          %1952 = vst [vmem:[%s326 + $0x48] sm:$0xff] %v1936
          %1953 = vst [vmem:[%s326 + $0x50] sm:$0xff] %v1937
          %1954 = vst [vmem:[%s326 + $0x58] sm:$0xff] %v1938
          %1955 = vst [vmem:[%s326 + $0x60] sm:$0xff] %v1939
          %1956 = vst [vmem:[%s326 + $0x68] sm:$0xff] %v1940
          %1957 = vst [vmem:[%s326 + $0x70] sm:$0xff] %v1941
          %1958 = vst [vmem:[%s326 + $0x78] sm:$0xff] %v1942
        $region52: #{tpu_custom_call.1} parent=39 // pred_fallthru
          _
        %s1959 = sand.u32 %s177, 1
        %s1960 = scalar_lea.sflag [#allocation4], %s1959
        %s1961 = sand.u32 %s177, 1
        %s1962 = smul.addr %s1961, 256
        %s1963 = scalar_lea.vmem [#allocation3], %s1962
        %s1964 = sand.u32 %s203, 1
        %s1965 = scalar_lea.sflag [#allocation6], %s1964
        %s1966 = sand.u32 %s203, 1
        %s1967 = smul.addr %s1966, 128
        %s1968 = scalar_lea.vmem [#allocation5], %s1967
        // Predicated region
        $region53: #{tpu_custom_call.1} parent=39 // pred_check
          %p1969 = pneg %p187
        $region54: #{tpu_custom_call.1} parent=39 // pred_check_branch
          %1971 = sbr.rel (%p1969) target = $region56
        $region55: #{tpu_custom_call.1} parent=39 // pred_region
          %s1972 = smul.u32 32, %s30
          %s1974 = ssub.s32 4096, 4096
          %1975 = vsyncadd %s1960, %s1974
          %s1976 = smul.addr %s29, 32
          %s1977 = sadd.s32 %s1972, %s1976
          %s1978 = smul.addr %s1977, 128
          %s1979 = scalar_lea.hbm %s5, %s1978
          %s1980 = sshll.u32 %s1963, 4
          %s1981 = int_to_ptr.vmem [resolvable:$true] %s1980
          %1986 = dma.vmem_to_hbm [thread:$0]  %s1981, 4096, %s1979, %s1960, 128, 128, 8
        $region56: #{tpu_custom_call.1} parent=39 // pred_fallthru
          _
        // Predicated region
        $region57: #{tpu_custom_call.1} parent=39 // pred_check
          %p1987 = pneg %p213
        $region58: #{tpu_custom_call.1} parent=39 // pred_check_branch
          %1989 = sbr.rel (%p1987) target = $region60
        $region59: #{tpu_custom_call.1} parent=39 // pred_region
          %s1991 = ssub.s32 2048, 2048
          %1992 = vsyncadd %s1965, %s1991
          %s1993 = smul.addr %s29, 16
          %s1994 = smul.addr %s1993, 128
          %s1995 = scalar_lea.hbm %s6, %s1994
          %s1996 = sshll.u32 %s1968, 4
          %s1997 = int_to_ptr.vmem [resolvable:$true] %s1996
          %2002 = dma.vmem_to_hbm [thread:$0]  %s1997, 2048, %s1995, %s1965, 256, 256, 16
        $region60: #{tpu_custom_call.1} parent=39 // pred_fallthru
          _
      $region40: #{tpu_custom_call.1} parent=5 // pred_fallthru
        _
      %p2003 = scmp.le.s32.totalorder 2, %s19
      // Predicated region
      $region61: #{tpu_custom_call.1} parent=5 // pred_check
        %p2004 = pneg %p2003
      $region62: #{tpu_custom_call.1} parent=5 // pred_check_branch
        %2006 = sbr.rel (%p2004) target = $region64
      $region63: #{tpu_custom_call.1} parent=5 // pred_region
        %s2007 = ssub.s32 %s19, 2
        // Predicated region
        $region65: #{tpu_custom_call.1} parent=63 // pred_check
          %p2008 = pneg %p193
        $region66: #{tpu_custom_call.1} parent=63 // pred_check_branch
          %2010 = sbr.rel (%p2008) target = $region68
        $region67: #{tpu_custom_call.1} parent=63 // pred_region
          %s2011 = sand.u32 %s178, 1
          %s2012 = scalar_lea.sflag [#allocation4], %s2011
          %s2013 = sand.u32 %s178, 1
          %s2014 = smul.addr %s2013, 256
          %s2015 = scalar_lea.vmem [#allocation3], %s2014
          %2016 = dma.done %s2012, 4096
        $region68: #{tpu_custom_call.1} parent=63 // pred_fallthru
          _
        // Predicated region
        $region69: #{tpu_custom_call.1} parent=63 // pred_check
          %p2017 = pneg %p219
        $region70: #{tpu_custom_call.1} parent=63 // pred_check_branch
          %2019 = sbr.rel (%p2017) target = $region72
        $region71: #{tpu_custom_call.1} parent=63 // pred_region
          %s2020 = sand.u32 %s204, 1
          %s2021 = scalar_lea.sflag [#allocation6], %s2020
          %s2022 = sand.u32 %s204, 1
          %s2023 = smul.addr %s2022, 128
          %s2024 = scalar_lea.vmem [#allocation5], %s2023
          %2025 = dma.done %s2021, 2048
        $region72: #{tpu_custom_call.1} parent=63 // pred_fallthru
          _
      $region64: #{tpu_custom_call.1} parent=5 // pred_fallthru
        _
    $region6: #{tpu_custom_call.1} parent=1 // loop_footer
      %s23 = sadd.s32 1, %s19
    $region7: #{tpu_custom_call.1} parent=1 // loop_footer_branch
      %18 = sbr.rel target = $region3
    $region8: #{tpu_custom_call.1} parent=1 // loop_exit
      _
    %2026 = vsyncpa [#allocation4], 1
    %s2027 = scalar_lea.sflag [#allocation4], 1
    %2028 = vsyncpa %s2027, 1
    %2029 = vsyncpa [#allocation6], 1
    %s2030 = scalar_lea.sflag [#allocation6], 1
    %2031 = vsyncpa %s2030, 1

</llo_original>
